<compile_context>
chip_gen: v5e
topology: v5e:2x2
jax: 0.10.0
libtpu: 0.0.40
codegen_flags: <defaults>
</compile_context>

<pallas_src>
import functools

import jax
import jax.numpy as jnp
from jax import lax
from jax.experimental import pallas as pl
from jax.experimental.pallas import tpu as pltpu

_LANE = 128                 # pad target for node count and feature dims
_VMEM_BUDGET = 48 << 20     # conservative operand budget (v7x VMEM = 64 MiB)


def _round_up(x, m):
    return ((x + m - 1) // m) * m


def _fused_mlfpn_gcn_kernel(adj_ref, fea_ref, w_ref, b_ref, out_ref,
                            h_ref, sup_ref, *, n_layers, tm, adj_resident):
    """Fused multi-layer GCN forward.

    grid = (n_layers, n_row_tiles); layer axis is outermost (sequential).
      at row tile 0 of each layer:  support = H @ W[l]        (into VMEM)
      per row tile i:               rows    = adj[i,:] @ support + b[l]
                                    hidden:  H[i,:] = relu(rows)
                                    last:    out[i,:] = rows
    """
    l = pl.program_id(0)
    i = pl.program_id(1)
    is_last_layer = l == n_layers - 1

    # Stage the (padded) input features into the resident activation buffer.
    @pl.when(jnp.logical_and(l == 0, i == 0))
    def _():
        h_ref[...] = fea_ref[...]

    # support = H @ W[l]: computed once per layer, reused by all row tiles.
    @pl.when(i == 0)
    def _():
        sup_ref[...] = jnp.dot(
            h_ref[...], w_ref[...],
            preferred_element_type=jnp.float32,
            precision=lax.Precision.HIGHEST)

    r0 = pl.multiple_of(i * tm, tm)
    if adj_resident:
        adj_rows = adj_ref[pl.ds(r0, tm), :]      # full adj resident in VMEM
    else:
        adj_rows = adj_ref[...]                   # streamed [tm, N] row tile

    # Neighborhood aggregation for this row tile (MXU), bias add (VPU).
    row = jnp.dot(adj_rows, sup_ref[...],
                  preferred_element_type=jnp.float32,
                  precision=lax.Precision.HIGHEST)
    row = row + b_ref[...]

    # Hidden layers: ReLU and feed the resident activation buffer.
    @pl.when(jnp.logical_not(is_last_layer))
    def _():
        h_ref[pl.ds(r0, tm), :] = jnp.maximum(row, 0.0)

    # Last layer: write the (un-activated) output rows.
    @pl.when(is_last_layer)
    def _():
        out_ref[pl.ds(r0, tm), :] = row.astype(out_ref.dtype)


def mlfpn_gcn_forward(fea, adj, params, *, tm=128):
    """Matches MLFPN_GCN.forward: ReLU after every layer except the last."""
    n, f_in = fea.shape
    n_layers = len(params)
    assert n_layers >= 1
    d_out_last = params[-1][0].shape[1]

    # Padded sizes: lane-dense feature axis, row tiles divide padded node count.
    f_pad = _round_up(f_in, _LANE)
    for (w, _) in params:
        f_pad = max(f_pad, _round_up(w.shape[1], _LANE))
    n_pad = _round_up(n, max(tm, _LANE))
    m_tiles = n_pad // tm

    f32 = jnp.float32
    fea_p = jnp.zeros((n_pad, f_pad), f32).at[:n, :f_in].set(fea.astype(f32))
    adj_p = jnp.zeros((n_pad, n_pad), f32).at[:n, :n].set(adj.astype(f32))

    w_all = jnp.zeros((n_layers, f_pad, f_pad), f32)
    b_all = jnp.zeros((n_layers, 1, f_pad), f32)
    for li, (w, b) in enumerate(params):
        din, dout = w.shape
        w_all = w_all.at[li, :din, :dout].set(w.astype(f32))
        b_all = b_all.at[li, 0, :dout].set(jnp.reshape(b, (-1,)).astype(f32))

    # VMEM accounting (bytes).  BlockSpec operands counted as double-buffered.
    common = 4 * (2 * n_pad * f_pad        # fea (resident input)
                  + 2 * f_pad * f_pad      # W[l]
                  + 2 * f_pad              # b[l]
                  + 2 * n_pad * f_pad      # out (resident output)
                  + 2 * n_pad * f_pad)     # H + support scratch
    streamed_total = common + 4 * 2 * tm * n_pad
    resident_total = common + 4 * 2 * n_pad * n_pad
    adj_resident = resident_total <= _VMEM_BUDGET

    if adj_resident:
        # Constant-index block: fetched from HBM exactly once for all layers.
        adj_spec = pl.BlockSpec((n_pad, n_pad), lambda l, i: (0, 0))
        adj_read_elems = adj_p.size
        est_vmem = resident_total
    else:
        # Streamed row tiles: re-read once per layer (large-graph fallback).
        adj_spec = pl.BlockSpec((tm, n_pad), lambda l, i: (i, 0))
        adj_read_elems = adj_p.size * n_layers
        est_vmem = streamed_total

    vmem_limit = int(min(max(est_vmem + (8 << 20), 32 << 20), 64 << 20))

    kernel = functools.partial(_fused_mlfpn_gcn_kernel,
                               n_layers=n_layers, tm=tm,
                               adj_resident=adj_resident)

    flops = n_layers * (2 * n_pad * f_pad * f_pad + 2 * n_pad * n_pad * f_pad)
    bytes_accessed = 4 * (adj_read_elems + fea_p.size + w_all.size
                          + b_all.size + n_pad * f_pad)

    out_p = pl.pallas_call(
        kernel,
        out_shape=jax.ShapeDtypeStruct((n_pad, f_pad), f32),
        grid_spec=pltpu.PrefetchScalarGridSpec(
            num_scalar_prefetch=0,
            grid=(n_layers, m_tiles),
            in_specs=[
                adj_spec,                                              # adj
                pl.BlockSpec((n_pad, f_pad), lambda l, i: (0, 0)),     # fea
                pl.BlockSpec((None, f_pad, f_pad),
                             lambda l, i: (l, 0, 0)),                  # W[l]
                pl.BlockSpec((None, 1, f_pad),
                             lambda l, i: (l, 0, 0)),                  # b[l]
            ],
            out_specs=pl.BlockSpec((n_pad, f_pad), lambda l, i: (0, 0)),
            scratch_shapes=[
                pltpu.VMEM((n_pad, f_pad), jnp.float32),   # activation H
                pltpu.VMEM((n_pad, f_pad), jnp.float32),   # support = H @ W
            ],
        ),
        compiler_params=pltpu.CompilerParams(
            # Row tiles share the H/support scratch across layers, so both grid
            # axes must run sequentially ("arbitrary").
            dimension_semantics=("arbitrary", "arbitrary"),
            vmem_limit_bytes=vmem_limit),
        cost_estimate=pl.CostEstimate(
            flops=flops, transcendentals=0, bytes_accessed=bytes_accessed),
    )(adj_p, fea_p, w_all, b_all)

    return out_p[:n, :d_out_last]


def init_mlfpn_gcn_params(dims, key):
    """Deterministic glorot-uniform weights + zero bias for each GCN layer."""
    params = []
    for i in range(len(dims) - 1):
        key, wk = jax.random.split(key)
        fan_in, fan_out = dims[i], dims[i + 1]
        limit = (6.0 / (fan_in + fan_out)) ** 0.5
        w = jax.random.uniform(wk, (fan_in, fan_out), jnp.float32, -limit, limit)
        b = jnp.zeros((1, fan_out), jnp.float32)
        params.append((w, b))
    return params


def _reference_forward(fea, adj, params):
    out = fea
    n_layers = len(params)
    for li, (w, b) in enumerate(params):
        support = jnp.dot(out, w, precision="highest")
        out = jnp.dot(adj, support, precision="highest") + b
        if li < n_layers - 1:
            out = jnp.maximum(out, 0.0)
    return out


if __name__ == "__main__":
    key = jax.random.PRNGKey(0)
    k_fea, k_adj, k_par = jax.random.split(key, 3)

    # Small synthetic graph: 32 nodes, feature dims [16, 32, 8]
    N = 32
    dims = [16, 32, 8]

    fea = jax.random.normal(k_fea, (N, dims[0]), jnp.float32)

    # Symmetric, row-normalized dense adjacency with self-loops.
    a = (jax.random.uniform(k_adj, (N, N)) < 0.2).astype(jnp.float32)
    a = jnp.maximum(a, a.T) + jnp.eye(N, dtype=jnp.float32)
    deg = jnp.sum(a, axis=1, keepdims=True)
    adj = a / deg

    params = init_mlfpn_gcn_params(dims, k_par)

    out = mlfpn_gcn_forward(fea, adj, params)
    out = jax.block_until_ready(out)

    ref = _reference_forward(fea, adj, params)
    assert out.shape == (N, dims[-1])
    assert jnp.allclose(out, ref, rtol=1e-3, atol=1e-4), "mismatch vs reference"

    print("KERNEL_OK")
</pallas_src>

<mosaic_0001>
module attributes {stable_mosaic.version = 11 : i64} {
  func.func @_fused_mlfpn_gcn_kernel(%arg0: i32, %arg1: i32, %arg2: memref<128x128xf32, #tpu.memory_space<vmem>>, %arg3: memref<128x128xf32, #tpu.memory_space<vmem>>, %arg4: memref<1x128x128xf32, #tpu.memory_space<vmem>>, %arg5: memref<1x1x128xf32, #tpu.memory_space<vmem>>, %arg6: memref<128x128xf32, #tpu.memory_space<vmem>>, %arg7: memref<128x128xf32, #tpu.memory_space<vmem>>, %arg8: memref<128x128xf32, #tpu.memory_space<vmem>>) attributes {dimension_semantics = [#tpu.dimension_semantics<arbitrary>, #tpu.dimension_semantics<arbitrary>], iteration_bounds = array<i64: 2, 1>, scalar_prefetch = 0 : i64, scratch_operands = 2 : i64, tpu.core_type = #tpu.core_type<tc>, window_params = [{pipeline_mode = #tpu.pipeline_mode<synchronous>, transform_indices = @transform_0, window_bounds = array<i64: 128, 128>}, {pipeline_mode = #tpu.pipeline_mode<synchronous>, transform_indices = @transform_1, window_bounds = array<i64: 128, 128>}, {transform_indices = @transform_2, window_bounds = array<i64: 1, 128, 128>}, {transform_indices = @transform_3, window_bounds = array<i64: 1, 1, 128>}, {pipeline_mode = #tpu.pipeline_mode<synchronous>, transform_indices = @transform_4, window_bounds = array<i64: 128, 128>}]} {
    %c1_i32 = arith.constant 1 : i32
    %0 = arith.cmpi eq, %arg0, %c1_i32 : i32
    %c0_i32 = arith.constant 0 : i32
    %1 = arith.cmpi eq, %arg0, %c0_i32 : i32
    %c0_i32_0 = arith.constant 0 : i32
    %2 = arith.cmpi eq, %arg1, %c0_i32_0 : i32
    %3 = arith.andi %1, %2 : i1
    %4 = arith.extui %3 : i1 to i32
    %c0_i32_1 = arith.constant 0 : i32
    %5 = arith.cmpi ne, %4, %c0_i32_1 : i32
    scf.if %5 {
      %c0_11 = arith.constant 0 : index
      %c0_12 = arith.constant 0 : index
      %24 = vector.load %arg3[%c0_11, %c0_12] : memref<128x128xf32, #tpu.memory_space<vmem>>, vector<128x128xf32>
      %c0_13 = arith.constant 0 : index
      %c0_14 = arith.constant 0 : index
      %25 = vector.load %arg7[%c0_13, %c0_14] : memref<128x128xf32, #tpu.memory_space<vmem>>, vector<128x128xf32>
      tpu.vector_store %arg7[%c0_13, %c0_14], %24 {strides = array<i32>} : memref<128x128xf32, #tpu.memory_space<vmem>>, vector<128x128xf32>,
    } else {
    }
    %c0_i32_2 = arith.constant 0 : i32
    %6 = arith.cmpi eq, %arg1, %c0_i32_2 : i32
    %7 = arith.extui %6 : i1 to i32
    %c0_i32_3 = arith.constant 0 : i32
    %8 = arith.cmpi ne, %7, %c0_i32_3 : i32
    scf.if %8 {
      %c0_11 = arith.constant 0 : index
      %c0_12 = arith.constant 0 : index
      %24 = vector.load %arg7[%c0_11, %c0_12] : memref<128x128xf32, #tpu.memory_space<vmem>>, vector<128x128xf32>
      %c0_13 = arith.constant 0 : index
      %c0_14 = arith.constant 0 : index
      %c0_15 = arith.constant 0 : index
      %25 = vector.load %arg4[%c0_13, %c0_14, %c0_15] : memref<1x128x128xf32, #tpu.memory_space<vmem>>, vector<1x128x128xf32>
      %26 = vector.shape_cast %25 : vector<1x128x128xf32> to vector<128x128xf32>
      %cst_16 = arith.constant dense<0.000000e+00> : vector<128x128xf32>
      %27 = tpu.matmul %24, %26, %cst_16 {dimension_numbers = #tpu.dot_dimension_numbers<[1], [0], [0], [1], [0, 0, 1, 1], [], []>, precision = #tpu.contract_precision<fp32>} : vector<128x128xf32>, vector<128x128xf32>, vector<128x128xf32> -> vector<128x128xf32>
      %c0_17 = arith.constant 0 : index
      %c0_18 = arith.constant 0 : index
      %28 = vector.load %arg8[%c0_17, %c0_18] : memref<128x128xf32, #tpu.memory_space<vmem>>, vector<128x128xf32>
      tpu.vector_store %arg8[%c0_17, %c0_18], %27 {strides = array<i32>} : memref<128x128xf32, #tpu.memory_space<vmem>>, vector<128x128xf32>,
    } else {
    }
    %c128_i32 = arith.constant 128 : i32
    %9 = arith.muli %arg1, %c128_i32 : i32
    %10 = tpu.assume_multiple %9, 128 : i32
    %11 = arith.index_cast %10 : i32 to index
    %c0 = arith.constant 0 : index
    %12 = vector.load %arg2[%11, %c0] : memref<128x128xf32, #tpu.memory_space<vmem>>, vector<128x128xf32>
    %c0_4 = arith.constant 0 : index
    %c0_5 = arith.constant 0 : index
    %13 = vector.load %arg8[%c0_4, %c0_5] : memref<128x128xf32, #tpu.memory_space<vmem>>, vector<128x128xf32>
    %cst = arith.constant dense<0.000000e+00> : vector<128x128xf32>
    %14 = tpu.matmul %12, %13, %cst {dimension_numbers = #tpu.dot_dimension_numbers<[1], [0], [0], [1], [0, 0, 1, 1], [], []>, precision = #tpu.contract_precision<fp32>} : vector<128x128xf32>, vector<128x128xf32>, vector<128x128xf32> -> vector<128x128xf32>
    %c0_6 = arith.constant 0 : index
    %c0_7 = arith.constant 0 : index
    %c0_8 = arith.constant 0 : index
    %15 = vector.load %arg5[%c0_6, %c0_7, %c0_8] : memref<1x1x128xf32, #tpu.memory_space<vmem>>, vector<1x1x128xf32>
    %16 = vector.shape_cast %15 : vector<1x1x128xf32> to vector<1x128xf32>
    %17 = vector.broadcast %16 : vector<1x128xf32> to vector<128x128xf32>
    %18 = arith.addf %14, %17 : vector<128x128xf32>
    %true = arith.constant true
    %19 = arith.xori %0, %true : i1
    %20 = arith.extui %19 : i1 to i32
    %c0_i32_9 = arith.constant 0 : i32
    %21 = arith.cmpi ne, %20, %c0_i32_9 : i32
    scf.if %21 {
      %cst_11 = arith.constant 0.000000e+00 : f32
      %24 = vector.broadcast %cst_11 : f32 to vector<128x128xf32>
      %25 = arith.maximumf %18, %24 : vector<128x128xf32>
      %26 = arith.index_cast %10 : i32 to index
      %c0_12 = arith.constant 0 : index
      %27 = vector.load %arg7[%26, %c0_12] : memref<128x128xf32, #tpu.memory_space<vmem>>, vector<128x128xf32>
      tpu.vector_store %arg7[%26, %c0_12], %25 {strides = array<i32>} : memref<128x128xf32, #tpu.memory_space<vmem>>, vector<128x128xf32>,
    } else {
    }
    %22 = arith.extui %0 : i1 to i32
    %c0_i32_10 = arith.constant 0 : i32
    %23 = arith.cmpi ne, %22, %c0_i32_10 : i32
    scf.if %23 {
      %24 = arith.index_cast %10 : i32 to index
      %c0_11 = arith.constant 0 : index
      %25 = vector.load %arg6[%24, %c0_11] : memref<128x128xf32, #tpu.memory_space<vmem>>, vector<128x128xf32>
      tpu.vector_store %arg6[%24, %c0_11], %18 {strides = array<i32>} : memref<128x128xf32, #tpu.memory_space<vmem>>, vector<128x128xf32>,
    } else {
    }
    return
  }
  func.func @transform_0(%arg0: i32, %arg1: i32) -> (i32, i32) {
    %c0_i32 = arith.constant 0 : i32
    %c0_i32_0 = arith.constant 0 : i32
    %c0_i32_1 = arith.constant 0 : i32
    return %c0_i32, %c0_i32_0 : i32, i32
  }
  func.func @transform_1(%arg0: i32, %arg1: i32) -> (i32, i32) {
    %c0_i32 = arith.constant 0 : i32
    %c0_i32_0 = arith.constant 0 : i32
    %c0_i32_1 = arith.constant 0 : i32
    return %c0_i32, %c0_i32_0 : i32, i32
  }
  func.func @transform_2(%arg0: i32, %arg1: i32) -> (i32, i32, i32) {
    %c0_i32 = arith.constant 0 : i32
    %c0_i32_0 = arith.constant 0 : i32
    %c0_i32_1 = arith.constant 0 : i32
    return %arg0, %c0_i32, %c0_i32_0 : i32, i32, i32
  }
  func.func @transform_3(%arg0: i32, %arg1: i32) -> (i32, i32, i32) {
    %c0_i32 = arith.constant 0 : i32
    %c0_i32_0 = arith.constant 0 : i32
    %c0_i32_1 = arith.constant 0 : i32
    return %arg0, %c0_i32, %c0_i32_0 : i32, i32, i32
  }
  func.func @transform_4(%arg0: i32, %arg1: i32) -> (i32, i32) {
    %c0_i32 = arith.constant 0 : i32
    %c0_i32_0 = arith.constant 0 : i32
    %c0_i32_1 = arith.constant 0 : i32
    return %c0_i32, %c0_i32_0 : i32, i32
  }
}

</mosaic_0001>

<llo_original>
// kernel: tpu_custom_call.1
$region0: #{tpu_custom_call.1}
  #allocation0 [shape = 'u32[]', space=smem, size = 0x4, offset = 0x4, fixed_abs, tag = 'smem constant byte address 0x4 - core index']
  #allocation1 [shape = 'u32[72,128]{1,0:T(1,128)}', space=vmem, size = 0x9000, scoped, tag = 'internal scratch']
  #allocation2 [shape = 'f32[128,128]{1,0:T(8,128)}', space=vmem, size = 0x10000, scoped, tag = 'scratch operand']
  #allocation3 [shape = 'f32[128,128]{1,0:T(8,128)}', space=vmem, size = 0x10000, scoped, tag = 'scratch operand']
  %s0 = inlined_call_operand.hbm [shape: f32[128,128], index: 0, kind: input, shape index: {}]
  %s1 = inlined_call_operand.hbm [shape: f32[128,128], index: 1, kind: input, shape index: {}]
  %s2 = inlined_call_operand.hbm [shape: f32[2,128,128], index: 2, kind: input, shape index: {}]
  %s3 = inlined_call_operand.vmem [shape: f32[2,1,128], index: 3, kind: input, shape index: {}]
  %s4 = inlined_call_operand.hbm [shape: f32[128,128], index: 4, kind: output, shape index: {}]
  %s5 = sld [smem:[#allocation0]]
  $region77: #{tpu_custom_call.1} parent=0
    _
  %s7 = ssub.s32 1, %s5
  %s8 = scalar_select 0, %s7, %s5
  $region1: #{tpu_custom_call.1} parent=0
    #allocation4 [shape = 'u8[65536]{0}', space=vmem, size = 0x10000, scoped, tag = 'input window, operand 0, single buffered']
    #allocation5 [shape = 's32[2]{0}', space=sflag, size = 0x8, scoped, tag = 'scoped memory for tpu_custom_call.1']
    #allocation6 [shape = 's32[2]{0}', space=sflag, size = 0x8, scoped, tag = 'scoped memory for tpu_custom_call.1']
    #allocation7 [shape = 'u8[65536]{0}', space=vmem, size = 0x10000, scoped, tag = 'input window, operand 1, single buffered']
    #allocation8 [shape = 's32[1]{0}', space=sflag, size = 0x4, scoped, tag = 'scoped memory for tpu_custom_call.1']
    #allocation9 [shape = 'u8[131072]{0}', space=vmem, size = 0x20000, scoped, tag = 'input window, operand 2']
    #allocation10 [shape = 'u8[65536]{0}', space=vmem, size = 0x10000, scoped, tag = 'output window, operand 0, single buffered']
    %9 = vsyncpa [#allocation5], 0
    %10 = vsyncpa [#allocation8], 0
    %11 = vsyncpa [#allocation6], 0
    loop: start=0, step=1, limit=4
    $region2: #{tpu_custom_call.1} parent=1 // loop_pre_header
      _
    $region3: #{tpu_custom_call.1} parent=1 // loop_header
      %s13 = sphi 0, %s17
      %p14 = scmp.ge.s32.totalorder %s13, 4
      %s20 = sphi 0, %s32
      %s21 = sphi 0, %s28
      %s22 = sphi 0, %s20
      %s23 = sphi 0, %s21
      %s24 = sphi 0, %s22
      %s25 = sphi 0, %s23
      %s33 = sphi 0, %s33
      %s35 = sphi 0, %s33
      %s36 = sphi 0, %s35
      %s50 = sphi 0, %s36
      %s54 = sphi 0, %s54
      %s56 = sphi 0, %s54
      %s57 = sphi 0, %s56
      %s71 = sphi 0, %s57
      %s77 = sphi 0, %s79
      %s80 = sphi 0, %s77
      %s81 = sphi 0, %s80
      %s97 = sphi 0, %s81
      %s103 = sphi 0, %s105
      %s106 = sphi 0, %s103
      %s107 = sphi 0, %s106
      %s123 = sphi 0, %s107
      %s127 = sphi 0, %s127
      %s129 = sphi 0, %s127
      %s130 = sphi 0, %s129
      %s144 = sphi 0, %s130
    $region4: #{tpu_custom_call.1} parent=1 // loop_header_branch
      %16 = sbr.rel (%p14) target = $region8
    $region5: #{tpu_custom_call.1} parent=1 // loop_body
      %s18 = ssub.s32 %s13, 1
      %s19 = ssub.s32 %s13, 2
      %s26 = sadd.s32 1, %s21
      %p27 = scmp.ge.s32.totalorder %s26, 1
      %s28 = scalar_select %p27, 0, %s26
      %s29 = sadd.s32 1, %s20
      %s30 = scalar_select %p27, %s29, %s20
      %p31 = scmp.ge.s32.totalorder %s30, 2
      %s32 = scalar_select %p31, 0, %s30
      %s34 = sadd.s32 %s33, 1
      %p37 = scmp.eq.s32.totalorder %s13, 1
      %p38 = scmp.ne.s32.totalorder %s33, %s35
      %p39 = scmp.eq.s32.totalorder %s13, 0
      %p40 = por %p38, %p39
      %p41 = scmp.ne.s32.totalorder %s33, %s35
      %p42 = scmp.eq.s32.totalorder %s18, 1
      %p43 = por %p41, %p42
      %p44 = scmp.ne.s32.totalorder %s35, %s36
      %p45 = scmp.eq.s32.totalorder %s18, 0
      %p46 = por %p44, %p45
      %p47 = scmp.ne.s32.totalorder %s35, %s36
      %p48 = scmp.eq.s32.totalorder %s19, 1
      %p49 = por %p47, %p48
      %p51 = scmp.ne.s32.totalorder %s36, %s50
      %p52 = scmp.eq.s32.totalorder %s19, 0
      %p53 = por %p51, %p52
      %s55 = sadd.s32 %s54, 1
      %p58 = scmp.eq.s32.totalorder %s13, 1
      %p59 = scmp.ne.s32.totalorder %s54, %s56
      %p60 = scmp.eq.s32.totalorder %s13, 0
      %p61 = por %p59, %p60
      %p62 = scmp.ne.s32.totalorder %s54, %s56
      %p63 = scmp.eq.s32.totalorder %s18, 1
      %p64 = por %p62, %p63
      %p65 = scmp.ne.s32.totalorder %s56, %s57
      %p66 = scmp.eq.s32.totalorder %s18, 0
      %p67 = por %p65, %p66
      %p68 = scmp.ne.s32.totalorder %s56, %s57
      %p69 = scmp.eq.s32.totalorder %s19, 1
      %p70 = por %p68, %p69
      %p72 = scmp.ne.s32.totalorder %s57, %s71
      %p73 = scmp.eq.s32.totalorder %s19, 0
      %p74 = por %p72, %p73
      %s75 = ssub.s32 %s20, %s32
      %p76 = scmp.eq.s32.totalorder %s75, 0
      %s78 = sadd.s32 %s77, 1
      %s79 = scalar_select %p76, %s77, %s78
      %p82 = pneg %p76
      %p83 = scmp.eq.s32.totalorder %s13, 1
      %p84 = por %p82, %p83
      %p85 = scmp.ne.s32.totalorder %s77, %s80
      %p86 = scmp.eq.s32.totalorder %s13, 0
      %p87 = por %p85, %p86
      %p88 = scmp.ne.s32.totalorder %s77, %s80
      %p89 = scmp.eq.s32.totalorder %s18, 1
      %p90 = por %p88, %p89
      %p91 = scmp.ne.s32.totalorder %s80, %s81
      %p92 = scmp.eq.s32.totalorder %s18, 0
      %p93 = por %p91, %p92
      %p94 = scmp.ne.s32.totalorder %s80, %s81
      %p95 = scmp.eq.s32.totalorder %s19, 1
      %p96 = por %p94, %p95
      %p98 = scmp.ne.s32.totalorder %s81, %s97
      %p99 = scmp.eq.s32.totalorder %s19, 0
      %p100 = por %p98, %p99
      %s101 = ssub.s32 %s20, %s32
      %p102 = scmp.eq.s32.totalorder %s101, 0
      %s104 = sadd.s32 %s103, 1
      %s105 = scalar_select %p102, %s103, %s104
      %p108 = pneg %p102
      %p109 = scmp.eq.s32.totalorder %s13, 1
      %p110 = por %p108, %p109
      %p111 = scmp.ne.s32.totalorder %s103, %s106
      %p112 = scmp.eq.s32.totalorder %s13, 0
      %p113 = por %p111, %p112
      %p114 = scmp.ne.s32.totalorder %s103, %s106
      %p115 = scmp.eq.s32.totalorder %s18, 1
      %p116 = por %p114, %p115
      %p117 = scmp.ne.s32.totalorder %s106, %s107
      %p118 = scmp.eq.s32.totalorder %s18, 0
      %p119 = por %p117, %p118
      %p120 = scmp.ne.s32.totalorder %s106, %s107
      %p121 = scmp.eq.s32.totalorder %s19, 1
      %p122 = por %p120, %p121
      %p124 = scmp.ne.s32.totalorder %s107, %s123
      %p125 = scmp.eq.s32.totalorder %s19, 0
      %p126 = por %p124, %p125
      %s128 = sadd.s32 %s127, 1
      %p131 = scmp.eq.s32.totalorder %s13, 1
      %p132 = scmp.ne.s32.totalorder %s127, %s129
      %p133 = scmp.eq.s32.totalorder %s13, 0
      %p134 = por %p132, %p133
      %p135 = scmp.ne.s32.totalorder %s127, %s129
      %p136 = scmp.eq.s32.totalorder %s18, 1
      %p137 = por %p135, %p136
      %p138 = scmp.ne.s32.totalorder %s129, %s130
      %p139 = scmp.eq.s32.totalorder %s18, 0
      %p140 = por %p138, %p139
      %p141 = scmp.ne.s32.totalorder %s129, %s130
      %p142 = scmp.eq.s32.totalorder %s19, 1
      %p143 = por %p141, %p142
      %p145 = scmp.ne.s32.totalorder %s130, %s144
      %p146 = scmp.eq.s32.totalorder %s19, 0
      %p147 = por %p145, %p146
      %p148 = scmp.le.s32.totalorder 1, %s13
      %p149 = scmp.lt.s32.totalorder %s13, 3
      %p150 = pnand %p148, %p149
      %p151 = pneg %p150
      // Predicated region
      $region9: #{tpu_custom_call.1} parent=5 // pred_check
        _
      $region10: #{tpu_custom_call.1} parent=5 // pred_check_branch
        %153 = sbr.rel (%p150) target = $region12
      $region11: #{tpu_custom_call.1} parent=5 // pred_region
        %s154 = ssub.s32 %s13, 1
        // Predicated region
        $region13: #{tpu_custom_call.1} parent=11 // pred_check
          %p155 = pneg %p46
        $region14: #{tpu_custom_call.1} parent=11 // pred_check_branch
          %157 = sbr.rel (%p155) target = $region16
        $region15: #{tpu_custom_call.1} parent=11 // pred_region
          %159 = vsyncadd [#allocation5], 0
          %s160 = sshll.u32 %s0, 4
          %s161 = int_to_ptr.hbm [resolvable:$true] %s160
          %s162 = sshll.u32 [#allocation4], 4
          %s163 = int_to_ptr.vmem [resolvable:$true] %s162
          %168 = dma.hbm_to_vmem [thread:$0]  %s161, 2048, %s163, [#allocation5], 128, 128, 8
        $region16: #{tpu_custom_call.1} parent=11 // pred_fallthru
          _
        // Predicated region
        $region17: #{tpu_custom_call.1} parent=11 // pred_check
          %p169 = pneg %p67
        $region18: #{tpu_custom_call.1} parent=11 // pred_check_branch
          %171 = sbr.rel (%p169) target = $region20
        $region19: #{tpu_custom_call.1} parent=11 // pred_region
          %173 = vsyncadd [#allocation8], 0
          %s174 = sshll.u32 %s1, 4
          %s175 = int_to_ptr.hbm [resolvable:$true] %s174
          %s176 = sshll.u32 [#allocation7], 4
          %s177 = int_to_ptr.vmem [resolvable:$true] %s176
          %182 = dma.hbm_to_vmem [thread:$0]  %s175, 2048, %s177, [#allocation8], 128, 128, 8
        $region20: #{tpu_custom_call.1} parent=11 // pred_fallthru
          _
      $region12: #{tpu_custom_call.1} parent=5 // pred_fallthru
        _
      %p183 = scmp.lt.s32.totalorder %s13, 2
      // Predicated region
      $region21: #{tpu_custom_call.1} parent=5 // pred_check
        %p184 = pneg %p183
      $region22: #{tpu_custom_call.1} parent=5 // pred_check_branch
        %186 = sbr.rel (%p184) target = $region24
      $region23: #{tpu_custom_call.1} parent=5 // pred_region
        // Predicated region
        $region25: #{tpu_custom_call.1} parent=23 // pred_check
          %p187 = pneg %p87
        $region26: #{tpu_custom_call.1} parent=23 // pred_check_branch
          %189 = sbr.rel (%p187) target = $region28
        $region27: #{tpu_custom_call.1} parent=23 // pred_region
          %s190 = sand.u32 %s13, 1
          %s191 = scalar_lea.sflag [#allocation5], %s190
          %s192 = sand.u32 %s77, 1
          %s193 = smul.addr %s192, 128
          %s194 = scalar_lea.vmem [#allocation9], %s193
          %196 = vsyncadd %s191, 0
          %s197 = smul.addr %s20, 16
          %s198 = smul.addr %s197, 8
          %s199 = scalar_lea.hbm %s2, %s198
          %s200 = sshll.u32 %s199, 4
          %s201 = int_to_ptr.hbm [resolvable:$true] %s200
          %s202 = sshll.u32 %s194, 4
          %s203 = int_to_ptr.vmem [resolvable:$true] %s202
          %208 = dma.hbm_to_vmem [thread:$0]  %s201, 2048, %s203, %s191, 128, 128, 8
        $region28: #{tpu_custom_call.1} parent=23 // pred_fallthru
          _
        // Predicated region
        $region29: #{tpu_custom_call.1} parent=23 // pred_check
          %p209 = pneg %p113
        $region30: #{tpu_custom_call.1} parent=23 // pred_check_branch
          %211 = sbr.rel (%p209) target = $region32
        $region31: #{tpu_custom_call.1} parent=23 // pred_region
          %p212 = scmp.lt.s32.totalorder %s20, 1
          %s213 = scalar_select %p212, %s20, 1
          %s214 = scalar_lea.vmem %s3, %s213
        $region32: #{tpu_custom_call.1} parent=23 // pred_fallthru
          _
      $region24: #{tpu_custom_call.1} parent=5 // pred_fallthru
        _
      %p215 = scmp.le.s32.totalorder 1, %s13
      %p216 = scmp.lt.s32.totalorder %s13, 3
      %p217 = pnand %p215, %p216
      %p218 = pneg %p217
      // Predicated region
      $region33: #{tpu_custom_call.1} parent=5 // pred_check
        _
      $region34: #{tpu_custom_call.1} parent=5 // pred_check_branch
        %220 = sbr.rel (%p217) target = $region36
      $region35: #{tpu_custom_call.1} parent=5 // pred_region
        %s221 = ssub.s32 %s13, 1
        // Predicated region
        $region37: #{tpu_custom_call.1} parent=35 // pred_check
          %p222 = pneg %p46
        $region38: #{tpu_custom_call.1} parent=35 // pred_check_branch
          %224 = sbr.rel (%p222) target = $region40
        $region39: #{tpu_custom_call.1} parent=35 // pred_region
          %226 = dma.done [#allocation5], 2048
        $region40: #{tpu_custom_call.1} parent=35 // pred_fallthru
          _
        // Predicated region
        $region41: #{tpu_custom_call.1} parent=35 // pred_check
          %p227 = pneg %p67
        $region42: #{tpu_custom_call.1} parent=35 // pred_check_branch
          %229 = sbr.rel (%p227) target = $region44
        $region43: #{tpu_custom_call.1} parent=35 // pred_region
          %231 = dma.done [#allocation8], 2048
        $region44: #{tpu_custom_call.1} parent=35 // pred_fallthru
          _
        %s232 = sand.u32 %s18, 1
        %s233 = scalar_lea.sflag [#allocation5], %s232
        %s234 = sand.u32 %s80, 1
        %s235 = smul.addr %s234, 128
        %s236 = scalar_lea.vmem [#allocation9], %s235
        // Predicated region
        $region45: #{tpu_custom_call.1} parent=35 // pred_check
          %p237 = pneg %p93
        $region46: #{tpu_custom_call.1} parent=35 // pred_check_branch
          %239 = sbr.rel (%p237) target = $region48
        $region47: #{tpu_custom_call.1} parent=35 // pred_region
          %241 = dma.done %s233, 2048
        $region48: #{tpu_custom_call.1} parent=35 // pred_fallthru
          _
        %p242 = pneg %p46
        %p243 = pneg %p43
        %p244 = pneg %p67
        %p245 = pneg %p64
        %s246 = sand.u32 %s18, 1
        %s247 = scalar_lea.sflag [#allocation5], %s246
        %s248 = sand.u32 %s80, 1
        %s249 = smul.addr %s248, 128
        %s250 = scalar_lea.vmem [#allocation9], %s249
        %p251 = pneg %p93
        %p252 = pneg %p90
        %p253 = scmp.lt.s32.totalorder %s22, 1
        %s254 = scalar_select %p253, %s22, 1
        %s255 = scalar_lea.vmem %s3, %s254
        %p256 = pneg %p119
        %p257 = pneg %p116
        %p258 = pneg %p140
        %p259 = pneg %p137
        %p260 = scmp.lt.s32.totalorder %s22, 1
        %s261 = scalar_select %p260, %s22, 1
        %s262 = scalar_lea.vmem %s3, %s261
        %p263 = scmp.eq.s32.totalorder %s22, 1
        %p264 = scmp.eq.s32.totalorder %s22, 0
        %p265 = scmp.eq.s32.totalorder %s23, 0
        %p266 = pnand %p264, %p265
        %p267 = pneg %p266
        // Predicated region
        $region49: #{tpu_custom_call.1} parent=35 // pred_check
          _
        $region50: #{tpu_custom_call.1} parent=35 // pred_check_branch
          %269 = sbr.rel (%p266) target = $region52
        $region51: #{tpu_custom_call.1} parent=35 // pred_region
          %v270 = vld [vmem:[#allocation7] sm:$0xff]
          %v271 = vld [vmem:[#allocation7 + $0x8] sm:$0xff]
          %v272 = vld [vmem:[#allocation7 + $0x10] sm:$0xff]
          %v273 = vld [vmem:[#allocation7 + $0x18] sm:$0xff]
          %v274 = vld [vmem:[#allocation7 + $0x20] sm:$0xff]
          %v275 = vld [vmem:[#allocation7 + $0x28] sm:$0xff]
          %v276 = vld [vmem:[#allocation7 + $0x30] sm:$0xff]
          %v277 = vld [vmem:[#allocation7 + $0x38] sm:$0xff]
          %v278 = vld [vmem:[#allocation7 + $0x40] sm:$0xff]
          %v279 = vld [vmem:[#allocation7 + $0x48] sm:$0xff]
          %v280 = vld [vmem:[#allocation7 + $0x50] sm:$0xff]
          %v281 = vld [vmem:[#allocation7 + $0x58] sm:$0xff]
          %v282 = vld [vmem:[#allocation7 + $0x60] sm:$0xff]
          %v283 = vld [vmem:[#allocation7 + $0x68] sm:$0xff]
          %v284 = vld [vmem:[#allocation7 + $0x70] sm:$0xff]
          %v285 = vld [vmem:[#allocation7 + $0x78] sm:$0xff]
          %286 = vst [vmem:[#allocation2] sm:$0xff] %v270
          %287 = vst [vmem:[#allocation2 + $0x8] sm:$0xff] %v271
          %288 = vst [vmem:[#allocation2 + $0x10] sm:$0xff] %v272
          %289 = vst [vmem:[#allocation2 + $0x18] sm:$0xff] %v273
          %290 = vst [vmem:[#allocation2 + $0x20] sm:$0xff] %v274
          %291 = vst [vmem:[#allocation2 + $0x28] sm:$0xff] %v275
          %292 = vst [vmem:[#allocation2 + $0x30] sm:$0xff] %v276
          %293 = vst [vmem:[#allocation2 + $0x38] sm:$0xff] %v277
          %294 = vst [vmem:[#allocation2 + $0x40] sm:$0xff] %v278
          %295 = vst [vmem:[#allocation2 + $0x48] sm:$0xff] %v279
          %296 = vst [vmem:[#allocation2 + $0x50] sm:$0xff] %v280
          %297 = vst [vmem:[#allocation2 + $0x58] sm:$0xff] %v281
          %298 = vst [vmem:[#allocation2 + $0x60] sm:$0xff] %v282
          %299 = vst [vmem:[#allocation2 + $0x68] sm:$0xff] %v283
          %300 = vst [vmem:[#allocation2 + $0x70] sm:$0xff] %v284
          %301 = vst [vmem:[#allocation2 + $0x78] sm:$0xff] %v285
        $region52: #{tpu_custom_call.1} parent=35 // pred_fallthru
          _
        // Predicated region
        $region53: #{tpu_custom_call.1} parent=35 // pred_check
          %p302 = pneg %p265
        $region54: #{tpu_custom_call.1} parent=35 // pred_check_branch
          %304 = sbr.rel (%p302) target = $region56
        $region55: #{tpu_custom_call.1} parent=35 // pred_region
          %v305 = vld [vmem:[#allocation2] sm:$0xff]
          %v306 = vld [vmem:[#allocation2 + $0x8] sm:$0xff]
          %v307 = vld [vmem:[#allocation2 + $0x10] sm:$0xff]
          %v308 = vld [vmem:[#allocation2 + $0x18] sm:$0xff]
          %v309 = vld [vmem:[#allocation2 + $0x20] sm:$0xff]
          %v310 = vld [vmem:[#allocation2 + $0x28] sm:$0xff]
          %v311 = vld [vmem:[#allocation2 + $0x30] sm:$0xff]
          %v312 = vld [vmem:[#allocation2 + $0x38] sm:$0xff]
          %v313 = vld [vmem:[#allocation2 + $0x40] sm:$0xff]
          %v314 = vld [vmem:[#allocation2 + $0x48] sm:$0xff]
          %v315 = vld [vmem:[#allocation2 + $0x50] sm:$0xff]
          %v316 = vld [vmem:[#allocation2 + $0x58] sm:$0xff]
          %v317 = vld [vmem:[#allocation2 + $0x60] sm:$0xff]
          %v318 = vld [vmem:[#allocation2 + $0x68] sm:$0xff]
          %v319 = vld [vmem:[#allocation2 + $0x70] sm:$0xff]
          %v320 = vld [vmem:[#allocation2 + $0x78] sm:$0xff]
          %v321 = vld [vmem:[%s236] sm:$0xff]
          %v322 = vld [vmem:[%s236 + $0x8] sm:$0xff]
          %v323 = vld [vmem:[%s236 + $0x10] sm:$0xff]
          %v324 = vld [vmem:[%s236 + $0x18] sm:$0xff]
          %v325 = vld [vmem:[%s236 + $0x20] sm:$0xff]
          %v326 = vld [vmem:[%s236 + $0x28] sm:$0xff]
          %v327 = vld [vmem:[%s236 + $0x30] sm:$0xff]
          %v328 = vld [vmem:[%s236 + $0x38] sm:$0xff]
          %v329 = vld [vmem:[%s236 + $0x40] sm:$0xff]
          %v330 = vld [vmem:[%s236 + $0x48] sm:$0xff]
          %v331 = vld [vmem:[%s236 + $0x50] sm:$0xff]
          %v332 = vld [vmem:[%s236 + $0x58] sm:$0xff]
          %v333 = vld [vmem:[%s236 + $0x60] sm:$0xff]
          %v334 = vld [vmem:[%s236 + $0x68] sm:$0xff]
          %v335 = vld [vmem:[%s236 + $0x70] sm:$0xff]
          %v336 = vld [vmem:[%s236 + $0x78] sm:$0xff]
          %v337 = vand.u32 %v336, 4294901760
          %338 = vmatpush.msra.mxu0 %v337
          %v339 = vand.u32 %v335, 4294901760
          %340 = vmatpush.msra.mxu0 %v339
          %v341 = vand.u32 %v334, 4294901760
          %342 = vmatpush.msra.mxu0 %v341
          %v343 = vand.u32 %v333, 4294901760
          %344 = vmatpush.msra.mxu0 %v343
          %v345 = vand.u32 %v332, 4294901760
          %346 = vmatpush.msra.mxu0 %v345
          %v347 = vand.u32 %v331, 4294901760
          %348 = vmatpush.msra.mxu0 %v347
          %v349 = vand.u32 %v330, 4294901760
          %350 = vmatpush.msra.mxu0 %v349
          %v351 = vand.u32 %v329, 4294901760
          %352 = vmatpush.msra.mxu0 %v351
          %v353 = vand.u32 %v328, 4294901760
          %354 = vmatpush.msra.mxu0 %v353
          %v355 = vand.u32 %v327, 4294901760
          %356 = vmatpush.msra.mxu0 %v355
          %v357 = vand.u32 %v326, 4294901760
          %358 = vmatpush.msra.mxu0 %v357
          %v359 = vand.u32 %v325, 4294901760
          %360 = vmatpush.msra.mxu0 %v359
          %v361 = vand.u32 %v324, 4294901760
          %362 = vmatpush.msra.mxu0 %v361
          %v363 = vand.u32 %v323, 4294901760
          %364 = vmatpush.msra.mxu0 %v363
          %v365 = vand.u32 %v322, 4294901760
          %366 = vmatpush.msra.mxu0 %v365
          %v367 = vand.u32 %v321, 4294901760
          %368 = vmatpush.msra.mxu0 %v367
          %v369 = vand.u32 %v305, 4294901760
          %v370 = vsub.f32 %v305, %v369
          %v371 = vand.u32 %v370, 4294901760
          %v372 = vsub.f32 %v370, %v371
          %v373 = vand.u32 %v372, 4294901760
          %374 = vmatmul.f32.gmra.mxu0 %v373
          %v375 = vpop.f32.mrf.mxu0
          %v376 = vadd.f32 0.0, %v375
          %v377 = vand.u32 %v306, 4294901760
          %v378 = vsub.f32 %v306, %v377
          %v379 = vand.u32 %v378, 4294901760
          %v380 = vsub.f32 %v378, %v379
          %v381 = vand.u32 %v380, 4294901760
          %382 = vmatmul.f32.gmra.mxu0 %v381
          %v383 = vpop.f32.mrf.mxu0
          %v384 = vadd.f32 0.0, %v383
          %v385 = vand.u32 %v307, 4294901760
          %v386 = vsub.f32 %v307, %v385
          %v387 = vand.u32 %v386, 4294901760
          %v388 = vsub.f32 %v386, %v387
          %v389 = vand.u32 %v388, 4294901760
          %390 = vmatmul.f32.gmra.mxu0 %v389
          %v391 = vpop.f32.mrf.mxu0
          %v392 = vadd.f32 0.0, %v391
          %v393 = vand.u32 %v308, 4294901760
          %v394 = vsub.f32 %v308, %v393
          %v395 = vand.u32 %v394, 4294901760
          %v396 = vsub.f32 %v394, %v395
          %v397 = vand.u32 %v396, 4294901760
          %398 = vmatmul.f32.gmra.mxu0 %v397
          %v399 = vpop.f32.mrf.mxu0
          %v400 = vadd.f32 0.0, %v399
          %v401 = vand.u32 %v309, 4294901760
          %v402 = vsub.f32 %v309, %v401
          %v403 = vand.u32 %v402, 4294901760
          %v404 = vsub.f32 %v402, %v403
          %v405 = vand.u32 %v404, 4294901760
          %406 = vmatmul.f32.gmra.mxu0 %v405
          %v407 = vpop.f32.mrf.mxu0
          %v408 = vadd.f32 0.0, %v407
          %v409 = vand.u32 %v310, 4294901760
          %v410 = vsub.f32 %v310, %v409
          %v411 = vand.u32 %v410, 4294901760
          %v412 = vsub.f32 %v410, %v411
          %v413 = vand.u32 %v412, 4294901760
          %414 = vmatmul.f32.gmra.mxu0 %v413
          %v415 = vpop.f32.mrf.mxu0
          %v416 = vadd.f32 0.0, %v415
          %v417 = vand.u32 %v311, 4294901760
          %v418 = vsub.f32 %v311, %v417
          %v419 = vand.u32 %v418, 4294901760
          %v420 = vsub.f32 %v418, %v419
          %v421 = vand.u32 %v420, 4294901760
          %422 = vmatmul.f32.gmra.mxu0 %v421
          %v423 = vpop.f32.mrf.mxu0
          %v424 = vadd.f32 0.0, %v423
          %v425 = vand.u32 %v312, 4294901760
          %v426 = vsub.f32 %v312, %v425
          %v427 = vand.u32 %v426, 4294901760
          %v428 = vsub.f32 %v426, %v427
          %v429 = vand.u32 %v428, 4294901760
          %430 = vmatmul.f32.gmra.mxu0 %v429
          %v431 = vpop.f32.mrf.mxu0
          %v432 = vadd.f32 0.0, %v431
          %v433 = vand.u32 %v313, 4294901760
          %v434 = vsub.f32 %v313, %v433
          %v435 = vand.u32 %v434, 4294901760
          %v436 = vsub.f32 %v434, %v435
          %v437 = vand.u32 %v436, 4294901760
          %438 = vmatmul.f32.gmra.mxu0 %v437
          %v439 = vpop.f32.mrf.mxu0
          %v440 = vadd.f32 0.0, %v439
          %v441 = vand.u32 %v314, 4294901760
          %v442 = vsub.f32 %v314, %v441
          %v443 = vand.u32 %v442, 4294901760
          %v444 = vsub.f32 %v442, %v443
          %v445 = vand.u32 %v444, 4294901760
          %446 = vmatmul.f32.gmra.mxu0 %v445
          %v447 = vpop.f32.mrf.mxu0
          %v448 = vadd.f32 0.0, %v447
          %v449 = vand.u32 %v315, 4294901760
          %v450 = vsub.f32 %v315, %v449
          %v451 = vand.u32 %v450, 4294901760
          %v452 = vsub.f32 %v450, %v451
          %v453 = vand.u32 %v452, 4294901760
          %454 = vmatmul.f32.gmra.mxu0 %v453
          %v455 = vpop.f32.mrf.mxu0
          %v456 = vadd.f32 0.0, %v455
          %v457 = vand.u32 %v316, 4294901760
          %v458 = vsub.f32 %v316, %v457
          %v459 = vand.u32 %v458, 4294901760
          %v460 = vsub.f32 %v458, %v459
          %v461 = vand.u32 %v460, 4294901760
          %462 = vmatmul.f32.gmra.mxu0 %v461
          %v463 = vpop.f32.mrf.mxu0
          %v464 = vadd.f32 0.0, %v463
          %v465 = vand.u32 %v317, 4294901760
          %v466 = vsub.f32 %v317, %v465
          %v467 = vand.u32 %v466, 4294901760
          %v468 = vsub.f32 %v466, %v467
          %v469 = vand.u32 %v468, 4294901760
          %470 = vmatmul.f32.gmra.mxu0 %v469
          %v471 = vpop.f32.mrf.mxu0
          %v472 = vadd.f32 0.0, %v471
          %v473 = vand.u32 %v318, 4294901760
          %v474 = vsub.f32 %v318, %v473
          %v475 = vand.u32 %v474, 4294901760
          %v476 = vsub.f32 %v474, %v475
          %v477 = vand.u32 %v476, 4294901760
          %478 = vmatmul.f32.gmra.mxu0 %v477
          %v479 = vpop.f32.mrf.mxu0
          %v480 = vadd.f32 0.0, %v479
          %v481 = vand.u32 %v319, 4294901760
          %v482 = vsub.f32 %v319, %v481
          %v483 = vand.u32 %v482, 4294901760
          %v484 = vsub.f32 %v482, %v483
          %v485 = vand.u32 %v484, 4294901760
          %486 = vmatmul.f32.gmra.mxu0 %v485
          %v487 = vpop.f32.mrf.mxu0
          %v488 = vadd.f32 0.0, %v487
          %v489 = vand.u32 %v320, 4294901760
          %v490 = vsub.f32 %v320, %v489
          %v491 = vand.u32 %v490, 4294901760
          %v492 = vsub.f32 %v490, %v491
          %v493 = vand.u32 %v492, 4294901760
          %494 = vmatmul.f32.gmra.mxu0 %v493
          %v495 = vpop.f32.mrf.mxu0
          %v496 = vadd.f32 0.0, %v495
          %497 = vdwg.mxu0
          %v498 = vand.u32 %v336, 4294901760
          %v499 = vsub.f32 %v336, %v498
          %v500 = vand.u32 %v499, 4294901760
          %v501 = vsub.f32 %v499, %v500
          %v502 = vand.u32 %v501, 4294901760
          %503 = vmatpush.msra.mxu0 %v502
          %v504 = vand.u32 %v335, 4294901760
          %v505 = vsub.f32 %v335, %v504
          %v506 = vand.u32 %v505, 4294901760
          %v507 = vsub.f32 %v505, %v506
          %v508 = vand.u32 %v507, 4294901760
          %509 = vmatpush.msra.mxu0 %v508
          %v510 = vand.u32 %v334, 4294901760
          %v511 = vsub.f32 %v334, %v510
          %v512 = vand.u32 %v511, 4294901760
          %v513 = vsub.f32 %v511, %v512
          %v514 = vand.u32 %v513, 4294901760
          %515 = vmatpush.msra.mxu0 %v514
          %v516 = vand.u32 %v333, 4294901760
          %v517 = vsub.f32 %v333, %v516
          %v518 = vand.u32 %v517, 4294901760
          %v519 = vsub.f32 %v517, %v518
          %v520 = vand.u32 %v519, 4294901760
          %521 = vmatpush.msra.mxu0 %v520
          %v522 = vand.u32 %v332, 4294901760
          %v523 = vsub.f32 %v332, %v522
          %v524 = vand.u32 %v523, 4294901760
          %v525 = vsub.f32 %v523, %v524
          %v526 = vand.u32 %v525, 4294901760
          %527 = vmatpush.msra.mxu0 %v526
          %v528 = vand.u32 %v331, 4294901760
          %v529 = vsub.f32 %v331, %v528
          %v530 = vand.u32 %v529, 4294901760
          %v531 = vsub.f32 %v529, %v530
          %v532 = vand.u32 %v531, 4294901760
          %533 = vmatpush.msra.mxu0 %v532
          %v534 = vand.u32 %v330, 4294901760
          %v535 = vsub.f32 %v330, %v534
          %v536 = vand.u32 %v535, 4294901760
          %v537 = vsub.f32 %v535, %v536
          %v538 = vand.u32 %v537, 4294901760
          %539 = vmatpush.msra.mxu0 %v538
          %v540 = vand.u32 %v329, 4294901760
          %v541 = vsub.f32 %v329, %v540
          %v542 = vand.u32 %v541, 4294901760
          %v543 = vsub.f32 %v541, %v542
          %v544 = vand.u32 %v543, 4294901760
          %545 = vmatpush.msra.mxu0 %v544
          %v546 = vand.u32 %v328, 4294901760
          %v547 = vsub.f32 %v328, %v546
          %v548 = vand.u32 %v547, 4294901760
          %v549 = vsub.f32 %v547, %v548
          %v550 = vand.u32 %v549, 4294901760
          %551 = vmatpush.msra.mxu0 %v550
          %v552 = vand.u32 %v327, 4294901760
          %v553 = vsub.f32 %v327, %v552
          %v554 = vand.u32 %v553, 4294901760
          %v555 = vsub.f32 %v553, %v554
          %v556 = vand.u32 %v555, 4294901760
          %557 = vmatpush.msra.mxu0 %v556
          %v558 = vand.u32 %v326, 4294901760
          %v559 = vsub.f32 %v326, %v558
          %v560 = vand.u32 %v559, 4294901760
          %v561 = vsub.f32 %v559, %v560
          %v562 = vand.u32 %v561, 4294901760
          %563 = vmatpush.msra.mxu0 %v562
          %v564 = vand.u32 %v325, 4294901760
          %v565 = vsub.f32 %v325, %v564
          %v566 = vand.u32 %v565, 4294901760
          %v567 = vsub.f32 %v565, %v566
          %v568 = vand.u32 %v567, 4294901760
          %569 = vmatpush.msra.mxu0 %v568
          %v570 = vand.u32 %v324, 4294901760
          %v571 = vsub.f32 %v324, %v570
          %v572 = vand.u32 %v571, 4294901760
          %v573 = vsub.f32 %v571, %v572
          %v574 = vand.u32 %v573, 4294901760
          %575 = vmatpush.msra.mxu0 %v574
          %v576 = vand.u32 %v323, 4294901760
          %v577 = vsub.f32 %v323, %v576
          %v578 = vand.u32 %v577, 4294901760
          %v579 = vsub.f32 %v577, %v578
          %v580 = vand.u32 %v579, 4294901760
          %581 = vmatpush.msra.mxu0 %v580
          %v582 = vand.u32 %v322, 4294901760
          %v583 = vsub.f32 %v322, %v582
          %v584 = vand.u32 %v583, 4294901760
          %v585 = vsub.f32 %v583, %v584
          %v586 = vand.u32 %v585, 4294901760
          %587 = vmatpush.msra.mxu0 %v586
          %v588 = vand.u32 %v321, 4294901760
          %v589 = vsub.f32 %v321, %v588
          %v590 = vand.u32 %v589, 4294901760
          %v591 = vsub.f32 %v589, %v590
          %v592 = vand.u32 %v591, 4294901760
          %593 = vmatpush.msra.mxu0 %v592
          %v594 = vand.u32 %v305, 4294901760
          %595 = vmatmul.f32.gmra.mxu0 %v594
          %v596 = vpop.f32.mrf.mxu0
          %v597 = vadd.f32 %v376, %v596
          %v598 = vand.u32 %v306, 4294901760
          %599 = vmatmul.f32.gmra.mxu0 %v598
          %v600 = vpop.f32.mrf.mxu0
          %v601 = vadd.f32 %v384, %v600
          %v602 = vand.u32 %v307, 4294901760
          %603 = vmatmul.f32.gmra.mxu0 %v602
          %v604 = vpop.f32.mrf.mxu0
          %v605 = vadd.f32 %v392, %v604
          %v606 = vand.u32 %v308, 4294901760
          %607 = vmatmul.f32.gmra.mxu0 %v606
          %v608 = vpop.f32.mrf.mxu0
          %v609 = vadd.f32 %v400, %v608
          %v610 = vand.u32 %v309, 4294901760
          %611 = vmatmul.f32.gmra.mxu0 %v610
          %v612 = vpop.f32.mrf.mxu0
          %v613 = vadd.f32 %v408, %v612
          %v614 = vand.u32 %v310, 4294901760
          %615 = vmatmul.f32.gmra.mxu0 %v614
          %v616 = vpop.f32.mrf.mxu0
          %v617 = vadd.f32 %v416, %v616
          %v618 = vand.u32 %v311, 4294901760
          %619 = vmatmul.f32.gmra.mxu0 %v618
          %v620 = vpop.f32.mrf.mxu0
          %v621 = vadd.f32 %v424, %v620
          %v622 = vand.u32 %v312, 4294901760
          %623 = vmatmul.f32.gmra.mxu0 %v622
          %v624 = vpop.f32.mrf.mxu0
          %v625 = vadd.f32 %v432, %v624
          %v626 = vand.u32 %v313, 4294901760
          %627 = vmatmul.f32.gmra.mxu0 %v626
          %v628 = vpop.f32.mrf.mxu0
          %v629 = vadd.f32 %v440, %v628
          %v630 = vand.u32 %v314, 4294901760
          %631 = vmatmul.f32.gmra.mxu0 %v630
          %v632 = vpop.f32.mrf.mxu0
          %v633 = vadd.f32 %v448, %v632
          %v634 = vand.u32 %v315, 4294901760
          %635 = vmatmul.f32.gmra.mxu0 %v634
          %v636 = vpop.f32.mrf.mxu0
          %v637 = vadd.f32 %v456, %v636
          %v638 = vand.u32 %v316, 4294901760
          %639 = vmatmul.f32.gmra.mxu0 %v638
          %v640 = vpop.f32.mrf.mxu0
          %v641 = vadd.f32 %v464, %v640
          %v642 = vand.u32 %v317, 4294901760
          %643 = vmatmul.f32.gmra.mxu0 %v642
          %v644 = vpop.f32.mrf.mxu0
          %v645 = vadd.f32 %v472, %v644
          %v646 = vand.u32 %v318, 4294901760
          %647 = vmatmul.f32.gmra.mxu0 %v646
          %v648 = vpop.f32.mrf.mxu0
          %v649 = vadd.f32 %v480, %v648
          %v650 = vand.u32 %v319, 4294901760
          %651 = vmatmul.f32.gmra.mxu0 %v650
          %v652 = vpop.f32.mrf.mxu0
          %v653 = vadd.f32 %v488, %v652
          %v654 = vand.u32 %v320, 4294901760
          %655 = vmatmul.f32.gmra.mxu0 %v654
          %v656 = vpop.f32.mrf.mxu0
          %v657 = vadd.f32 %v496, %v656
          %658 = vdwg.mxu0
          %v659 = vand.u32 %v336, 4294901760
          %v660 = vsub.f32 %v336, %v659
          %661 = vmatpush.msra.mxu0 %v660
          %v662 = vand.u32 %v335, 4294901760
          %v663 = vsub.f32 %v335, %v662
          %664 = vmatpush.msra.mxu0 %v663
          %v665 = vand.u32 %v334, 4294901760
          %v666 = vsub.f32 %v334, %v665
          %667 = vmatpush.msra.mxu0 %v666
          %v668 = vand.u32 %v333, 4294901760
          %v669 = vsub.f32 %v333, %v668
          %670 = vmatpush.msra.mxu0 %v669
          %v671 = vand.u32 %v332, 4294901760
          %v672 = vsub.f32 %v332, %v671
          %673 = vmatpush.msra.mxu0 %v672
          %v674 = vand.u32 %v331, 4294901760
          %v675 = vsub.f32 %v331, %v674
          %676 = vmatpush.msra.mxu0 %v675
          %v677 = vand.u32 %v330, 4294901760
          %v678 = vsub.f32 %v330, %v677
          %679 = vmatpush.msra.mxu0 %v678
          %v680 = vand.u32 %v329, 4294901760
          %v681 = vsub.f32 %v329, %v680
          %682 = vmatpush.msra.mxu0 %v681
          %v683 = vand.u32 %v328, 4294901760
          %v684 = vsub.f32 %v328, %v683
          %685 = vmatpush.msra.mxu0 %v684
          %v686 = vand.u32 %v327, 4294901760
          %v687 = vsub.f32 %v327, %v686
          %688 = vmatpush.msra.mxu0 %v687
          %v689 = vand.u32 %v326, 4294901760
          %v690 = vsub.f32 %v326, %v689
          %691 = vmatpush.msra.mxu0 %v690
          %v692 = vand.u32 %v325, 4294901760
          %v693 = vsub.f32 %v325, %v692
          %694 = vmatpush.msra.mxu0 %v693
          %v695 = vand.u32 %v324, 4294901760
          %v696 = vsub.f32 %v324, %v695
          %697 = vmatpush.msra.mxu0 %v696
          %v698 = vand.u32 %v323, 4294901760
          %v699 = vsub.f32 %v323, %v698
          %700 = vmatpush.msra.mxu0 %v699
          %v701 = vand.u32 %v322, 4294901760
          %v702 = vsub.f32 %v322, %v701
          %703 = vmatpush.msra.mxu0 %v702
          %v704 = vand.u32 %v321, 4294901760
          %v705 = vsub.f32 %v321, %v704
          %706 = vmatpush.msra.mxu0 %v705
          %v707 = vand.u32 %v305, 4294901760
          %v708 = vsub.f32 %v305, %v707
          %709 = vmatmul.f32.gmra.mxu0 %v708
          %v710 = vpop.f32.mrf.mxu0
          %v711 = vadd.f32 %v597, %v710
          %v712 = vand.u32 %v306, 4294901760
          %v713 = vsub.f32 %v306, %v712
          %714 = vmatmul.f32.gmra.mxu0 %v713
          %v715 = vpop.f32.mrf.mxu0
          %v716 = vadd.f32 %v601, %v715
          %v717 = vand.u32 %v307, 4294901760
          %v718 = vsub.f32 %v307, %v717
          %719 = vmatmul.f32.gmra.mxu0 %v718
          %v720 = vpop.f32.mrf.mxu0
          %v721 = vadd.f32 %v605, %v720
          %v722 = vand.u32 %v308, 4294901760
          %v723 = vsub.f32 %v308, %v722
          %724 = vmatmul.f32.gmra.mxu0 %v723
          %v725 = vpop.f32.mrf.mxu0
          %v726 = vadd.f32 %v609, %v725
          %v727 = vand.u32 %v309, 4294901760
          %v728 = vsub.f32 %v309, %v727
          %729 = vmatmul.f32.gmra.mxu0 %v728
          %v730 = vpop.f32.mrf.mxu0
          %v731 = vadd.f32 %v613, %v730
          %v732 = vand.u32 %v310, 4294901760
          %v733 = vsub.f32 %v310, %v732
          %734 = vmatmul.f32.gmra.mxu0 %v733
          %v735 = vpop.f32.mrf.mxu0
          %v736 = vadd.f32 %v617, %v735
          %v737 = vand.u32 %v311, 4294901760
          %v738 = vsub.f32 %v311, %v737
          %739 = vmatmul.f32.gmra.mxu0 %v738
          %v740 = vpop.f32.mrf.mxu0
          %v741 = vadd.f32 %v621, %v740
          %v742 = vand.u32 %v312, 4294901760
          %v743 = vsub.f32 %v312, %v742
          %744 = vmatmul.f32.gmra.mxu0 %v743
          %v745 = vpop.f32.mrf.mxu0
          %v746 = vadd.f32 %v625, %v745
          %v747 = vand.u32 %v313, 4294901760
          %v748 = vsub.f32 %v313, %v747
          %749 = vmatmul.f32.gmra.mxu0 %v748
          %v750 = vpop.f32.mrf.mxu0
          %v751 = vadd.f32 %v629, %v750
          %v752 = vand.u32 %v314, 4294901760
          %v753 = vsub.f32 %v314, %v752
          %754 = vmatmul.f32.gmra.mxu0 %v753
          %v755 = vpop.f32.mrf.mxu0
          %v756 = vadd.f32 %v633, %v755
          %v757 = vand.u32 %v315, 4294901760
          %v758 = vsub.f32 %v315, %v757
          %759 = vmatmul.f32.gmra.mxu0 %v758
          %v760 = vpop.f32.mrf.mxu0
          %v761 = vadd.f32 %v637, %v760
          %v762 = vand.u32 %v316, 4294901760
          %v763 = vsub.f32 %v316, %v762
          %764 = vmatmul.f32.gmra.mxu0 %v763
          %v765 = vpop.f32.mrf.mxu0
          %v766 = vadd.f32 %v641, %v765
          %v767 = vand.u32 %v317, 4294901760
          %v768 = vsub.f32 %v317, %v767
          %769 = vmatmul.f32.gmra.mxu0 %v768
          %v770 = vpop.f32.mrf.mxu0
          %v771 = vadd.f32 %v645, %v770
          %v772 = vand.u32 %v318, 4294901760
          %v773 = vsub.f32 %v318, %v772
          %774 = vmatmul.f32.gmra.mxu0 %v773
          %v775 = vpop.f32.mrf.mxu0
          %v776 = vadd.f32 %v649, %v775
          %v777 = vand.u32 %v319, 4294901760
          %v778 = vsub.f32 %v319, %v777
          %779 = vmatmul.f32.gmra.mxu0 %v778
          %v780 = vpop.f32.mrf.mxu0
          %v781 = vadd.f32 %v653, %v780
          %v782 = vand.u32 %v320, 4294901760
          %v783 = vsub.f32 %v320, %v782
          %784 = vmatmul.f32.gmra.mxu0 %v783
          %v785 = vpop.f32.mrf.mxu0
          %v786 = vadd.f32 %v657, %v785
          %787 = vdwg.mxu0
          %v788 = vand.u32 %v336, 4294901760
          %789 = vmatpush.msra.mxu0 %v788
          %v790 = vand.u32 %v335, 4294901760
          %791 = vmatpush.msra.mxu0 %v790
          %v792 = vand.u32 %v334, 4294901760
          %793 = vmatpush.msra.mxu0 %v792
          %v794 = vand.u32 %v333, 4294901760
          %795 = vmatpush.msra.mxu0 %v794
          %v796 = vand.u32 %v332, 4294901760
          %797 = vmatpush.msra.mxu0 %v796
          %v798 = vand.u32 %v331, 4294901760
          %799 = vmatpush.msra.mxu0 %v798
          %v800 = vand.u32 %v330, 4294901760
          %801 = vmatpush.msra.mxu0 %v800
          %v802 = vand.u32 %v329, 4294901760
          %803 = vmatpush.msra.mxu0 %v802
          %v804 = vand.u32 %v328, 4294901760
          %805 = vmatpush.msra.mxu0 %v804
          %v806 = vand.u32 %v327, 4294901760
          %807 = vmatpush.msra.mxu0 %v806
          %v808 = vand.u32 %v326, 4294901760
          %809 = vmatpush.msra.mxu0 %v808
          %v810 = vand.u32 %v325, 4294901760
          %811 = vmatpush.msra.mxu0 %v810
          %v812 = vand.u32 %v324, 4294901760
          %813 = vmatpush.msra.mxu0 %v812
          %v814 = vand.u32 %v323, 4294901760
          %815 = vmatpush.msra.mxu0 %v814
          %v816 = vand.u32 %v322, 4294901760
          %817 = vmatpush.msra.mxu0 %v816
          %v818 = vand.u32 %v321, 4294901760
          %819 = vmatpush.msra.mxu0 %v818
          %v820 = vand.u32 %v305, 4294901760
          %v821 = vsub.f32 %v305, %v820
          %v822 = vand.u32 %v821, 4294901760
          %823 = vmatmul.f32.gmra.mxu0 %v822
          %v824 = vpop.f32.mrf.mxu0
          %v825 = vadd.f32 %v711, %v824
          %v826 = vand.u32 %v306, 4294901760
          %v827 = vsub.f32 %v306, %v826
          %v828 = vand.u32 %v827, 4294901760
          %829 = vmatmul.f32.gmra.mxu0 %v828
          %v830 = vpop.f32.mrf.mxu0
          %v831 = vadd.f32 %v716, %v830
          %v832 = vand.u32 %v307, 4294901760
          %v833 = vsub.f32 %v307, %v832
          %v834 = vand.u32 %v833, 4294901760
          %835 = vmatmul.f32.gmra.mxu0 %v834
          %v836 = vpop.f32.mrf.mxu0
          %v837 = vadd.f32 %v721, %v836
          %v838 = vand.u32 %v308, 4294901760
          %v839 = vsub.f32 %v308, %v838
          %v840 = vand.u32 %v839, 4294901760
          %841 = vmatmul.f32.gmra.mxu0 %v840
          %v842 = vpop.f32.mrf.mxu0
          %v843 = vadd.f32 %v726, %v842
          %v844 = vand.u32 %v309, 4294901760
          %v845 = vsub.f32 %v309, %v844
          %v846 = vand.u32 %v845, 4294901760
          %847 = vmatmul.f32.gmra.mxu0 %v846
          %v848 = vpop.f32.mrf.mxu0
          %v849 = vadd.f32 %v731, %v848
          %v850 = vand.u32 %v310, 4294901760
          %v851 = vsub.f32 %v310, %v850
          %v852 = vand.u32 %v851, 4294901760
          %853 = vmatmul.f32.gmra.mxu0 %v852
          %v854 = vpop.f32.mrf.mxu0
          %v855 = vadd.f32 %v736, %v854
          %v856 = vand.u32 %v311, 4294901760
          %v857 = vsub.f32 %v311, %v856
          %v858 = vand.u32 %v857, 4294901760
          %859 = vmatmul.f32.gmra.mxu0 %v858
          %v860 = vpop.f32.mrf.mxu0
          %v861 = vadd.f32 %v741, %v860
          %v862 = vand.u32 %v312, 4294901760
          %v863 = vsub.f32 %v312, %v862
          %v864 = vand.u32 %v863, 4294901760
          %865 = vmatmul.f32.gmra.mxu0 %v864
          %v866 = vpop.f32.mrf.mxu0
          %v867 = vadd.f32 %v746, %v866
          %v868 = vand.u32 %v313, 4294901760
          %v869 = vsub.f32 %v313, %v868
          %v870 = vand.u32 %v869, 4294901760
          %871 = vmatmul.f32.gmra.mxu0 %v870
          %v872 = vpop.f32.mrf.mxu0
          %v873 = vadd.f32 %v751, %v872
          %v874 = vand.u32 %v314, 4294901760
          %v875 = vsub.f32 %v314, %v874
          %v876 = vand.u32 %v875, 4294901760
          %877 = vmatmul.f32.gmra.mxu0 %v876
          %v878 = vpop.f32.mrf.mxu0
          %v879 = vadd.f32 %v756, %v878
          %v880 = vand.u32 %v315, 4294901760
          %v881 = vsub.f32 %v315, %v880
          %v882 = vand.u32 %v881, 4294901760
          %883 = vmatmul.f32.gmra.mxu0 %v882
          %v884 = vpop.f32.mrf.mxu0
          %v885 = vadd.f32 %v761, %v884
          %v886 = vand.u32 %v316, 4294901760
          %v887 = vsub.f32 %v316, %v886
          %v888 = vand.u32 %v887, 4294901760
          %889 = vmatmul.f32.gmra.mxu0 %v888
          %v890 = vpop.f32.mrf.mxu0
          %v891 = vadd.f32 %v766, %v890
          %v892 = vand.u32 %v317, 4294901760
          %v893 = vsub.f32 %v317, %v892
          %v894 = vand.u32 %v893, 4294901760
          %895 = vmatmul.f32.gmra.mxu0 %v894
          %v896 = vpop.f32.mrf.mxu0
          %v897 = vadd.f32 %v771, %v896
          %v898 = vand.u32 %v318, 4294901760
          %v899 = vsub.f32 %v318, %v898
          %v900 = vand.u32 %v899, 4294901760
          %901 = vmatmul.f32.gmra.mxu0 %v900
          %v902 = vpop.f32.mrf.mxu0
          %v903 = vadd.f32 %v776, %v902
          %v904 = vand.u32 %v319, 4294901760
          %v905 = vsub.f32 %v319, %v904
          %v906 = vand.u32 %v905, 4294901760
          %907 = vmatmul.f32.gmra.mxu0 %v906
          %v908 = vpop.f32.mrf.mxu0
          %v909 = vadd.f32 %v781, %v908
          %v910 = vand.u32 %v320, 4294901760
          %v911 = vsub.f32 %v320, %v910
          %v912 = vand.u32 %v911, 4294901760
          %913 = vmatmul.f32.gmra.mxu0 %v912
          %v914 = vpop.f32.mrf.mxu0
          %v915 = vadd.f32 %v786, %v914
          %916 = vdwg.mxu0
          %v917 = vand.u32 %v336, 4294901760
          %v918 = vsub.f32 %v336, %v917
          %v919 = vand.u32 %v918, 4294901760
          %920 = vmatpush.msra.mxu0 %v919
          %v921 = vand.u32 %v335, 4294901760
          %v922 = vsub.f32 %v335, %v921
          %v923 = vand.u32 %v922, 4294901760
          %924 = vmatpush.msra.mxu0 %v923
          %v925 = vand.u32 %v334, 4294901760
          %v926 = vsub.f32 %v334, %v925
          %v927 = vand.u32 %v926, 4294901760
          %928 = vmatpush.msra.mxu0 %v927
          %v929 = vand.u32 %v333, 4294901760
          %v930 = vsub.f32 %v333, %v929
          %v931 = vand.u32 %v930, 4294901760
          %932 = vmatpush.msra.mxu0 %v931
          %v933 = vand.u32 %v332, 4294901760
          %v934 = vsub.f32 %v332, %v933
          %v935 = vand.u32 %v934, 4294901760
          %936 = vmatpush.msra.mxu0 %v935
          %v937 = vand.u32 %v331, 4294901760
          %v938 = vsub.f32 %v331, %v937
          %v939 = vand.u32 %v938, 4294901760
          %940 = vmatpush.msra.mxu0 %v939
          %v941 = vand.u32 %v330, 4294901760
          %v942 = vsub.f32 %v330, %v941
          %v943 = vand.u32 %v942, 4294901760
          %944 = vmatpush.msra.mxu0 %v943
          %v945 = vand.u32 %v329, 4294901760
          %v946 = vsub.f32 %v329, %v945
          %v947 = vand.u32 %v946, 4294901760
          %948 = vmatpush.msra.mxu0 %v947
          %v949 = vand.u32 %v328, 4294901760
          %v950 = vsub.f32 %v328, %v949
          %v951 = vand.u32 %v950, 4294901760
          %952 = vmatpush.msra.mxu0 %v951
          %v953 = vand.u32 %v327, 4294901760
          %v954 = vsub.f32 %v327, %v953
          %v955 = vand.u32 %v954, 4294901760
          %956 = vmatpush.msra.mxu0 %v955
          %v957 = vand.u32 %v326, 4294901760
          %v958 = vsub.f32 %v326, %v957
          %v959 = vand.u32 %v958, 4294901760
          %960 = vmatpush.msra.mxu0 %v959
          %v961 = vand.u32 %v325, 4294901760
          %v962 = vsub.f32 %v325, %v961
          %v963 = vand.u32 %v962, 4294901760
          %964 = vmatpush.msra.mxu0 %v963
          %v965 = vand.u32 %v324, 4294901760
          %v966 = vsub.f32 %v324, %v965
          %v967 = vand.u32 %v966, 4294901760
          %968 = vmatpush.msra.mxu0 %v967
          %v969 = vand.u32 %v323, 4294901760
          %v970 = vsub.f32 %v323, %v969
          %v971 = vand.u32 %v970, 4294901760
          %972 = vmatpush.msra.mxu0 %v971
          %v973 = vand.u32 %v322, 4294901760
          %v974 = vsub.f32 %v322, %v973
          %v975 = vand.u32 %v974, 4294901760
          %976 = vmatpush.msra.mxu0 %v975
          %v977 = vand.u32 %v321, 4294901760
          %v978 = vsub.f32 %v321, %v977
          %v979 = vand.u32 %v978, 4294901760
          %980 = vmatpush.msra.mxu0 %v979
          %v981 = vand.u32 %v305, 4294901760
          %982 = vmatmul.f32.gmra.mxu0 %v981
          %v983 = vpop.f32.mrf.mxu0
          %v984 = vadd.f32 %v825, %v983
          %v985 = vand.u32 %v306, 4294901760
          %986 = vmatmul.f32.gmra.mxu0 %v985
          %v987 = vpop.f32.mrf.mxu0
          %v988 = vadd.f32 %v831, %v987
          %v989 = vand.u32 %v307, 4294901760
          %990 = vmatmul.f32.gmra.mxu0 %v989
          %v991 = vpop.f32.mrf.mxu0
          %v992 = vadd.f32 %v837, %v991
          %v993 = vand.u32 %v308, 4294901760
          %994 = vmatmul.f32.gmra.mxu0 %v993
          %v995 = vpop.f32.mrf.mxu0
          %v996 = vadd.f32 %v843, %v995
          %v997 = vand.u32 %v309, 4294901760
          %998 = vmatmul.f32.gmra.mxu0 %v997
          %v999 = vpop.f32.mrf.mxu0
          %v1000 = vadd.f32 %v849, %v999
          %v1001 = vand.u32 %v310, 4294901760
          %1002 = vmatmul.f32.gmra.mxu0 %v1001
          %v1003 = vpop.f32.mrf.mxu0
          %v1004 = vadd.f32 %v855, %v1003
          %v1005 = vand.u32 %v311, 4294901760
          %1006 = vmatmul.f32.gmra.mxu0 %v1005
          %v1007 = vpop.f32.mrf.mxu0
          %v1008 = vadd.f32 %v861, %v1007
          %v1009 = vand.u32 %v312, 4294901760
          %1010 = vmatmul.f32.gmra.mxu0 %v1009
          %v1011 = vpop.f32.mrf.mxu0
          %v1012 = vadd.f32 %v867, %v1011
          %v1013 = vand.u32 %v313, 4294901760
          %1014 = vmatmul.f32.gmra.mxu0 %v1013
          %v1015 = vpop.f32.mrf.mxu0
          %v1016 = vadd.f32 %v873, %v1015
          %v1017 = vand.u32 %v314, 4294901760
          %1018 = vmatmul.f32.gmra.mxu0 %v1017
          %v1019 = vpop.f32.mrf.mxu0
          %v1020 = vadd.f32 %v879, %v1019
          %v1021 = vand.u32 %v315, 4294901760
          %1022 = vmatmul.f32.gmra.mxu0 %v1021
          %v1023 = vpop.f32.mrf.mxu0
          %v1024 = vadd.f32 %v885, %v1023
          %v1025 = vand.u32 %v316, 4294901760
          %1026 = vmatmul.f32.gmra.mxu0 %v1025
          %v1027 = vpop.f32.mrf.mxu0
          %v1028 = vadd.f32 %v891, %v1027
          %v1029 = vand.u32 %v317, 4294901760
          %1030 = vmatmul.f32.gmra.mxu0 %v1029
          %v1031 = vpop.f32.mrf.mxu0
          %v1032 = vadd.f32 %v897, %v1031
          %v1033 = vand.u32 %v318, 4294901760
          %1034 = vmatmul.f32.gmra.mxu0 %v1033
          %v1035 = vpop.f32.mrf.mxu0
          %v1036 = vadd.f32 %v903, %v1035
          %v1037 = vand.u32 %v319, 4294901760
          %1038 = vmatmul.f32.gmra.mxu0 %v1037
          %v1039 = vpop.f32.mrf.mxu0
          %v1040 = vadd.f32 %v909, %v1039
          %v1041 = vand.u32 %v320, 4294901760
          %1042 = vmatmul.f32.gmra.mxu0 %v1041
          %v1043 = vpop.f32.mrf.mxu0
          %v1044 = vadd.f32 %v915, %v1043
          %1045 = vdwg.mxu0
          %v1046 = vand.u32 %v336, 4294901760
          %1047 = vmatpush.msra.mxu0 %v1046
          %v1048 = vand.u32 %v335, 4294901760
          %1049 = vmatpush.msra.mxu0 %v1048
          %v1050 = vand.u32 %v334, 4294901760
          %1051 = vmatpush.msra.mxu0 %v1050
          %v1052 = vand.u32 %v333, 4294901760
          %1053 = vmatpush.msra.mxu0 %v1052
          %v1054 = vand.u32 %v332, 4294901760
          %1055 = vmatpush.msra.mxu0 %v1054
          %v1056 = vand.u32 %v331, 4294901760
          %1057 = vmatpush.msra.mxu0 %v1056
          %v1058 = vand.u32 %v330, 4294901760
          %1059 = vmatpush.msra.mxu0 %v1058
          %v1060 = vand.u32 %v329, 4294901760
          %1061 = vmatpush.msra.mxu0 %v1060
          %v1062 = vand.u32 %v328, 4294901760
          %1063 = vmatpush.msra.mxu0 %v1062
          %v1064 = vand.u32 %v327, 4294901760
          %1065 = vmatpush.msra.mxu0 %v1064
          %v1066 = vand.u32 %v326, 4294901760
          %1067 = vmatpush.msra.mxu0 %v1066
          %v1068 = vand.u32 %v325, 4294901760
          %1069 = vmatpush.msra.mxu0 %v1068
          %v1070 = vand.u32 %v324, 4294901760
          %1071 = vmatpush.msra.mxu0 %v1070
          %v1072 = vand.u32 %v323, 4294901760
          %1073 = vmatpush.msra.mxu0 %v1072
          %v1074 = vand.u32 %v322, 4294901760
          %1075 = vmatpush.msra.mxu0 %v1074
          %v1076 = vand.u32 %v321, 4294901760
          %1077 = vmatpush.msra.mxu0 %v1076
          %v1078 = vand.u32 %v305, 4294901760
          %1079 = vmatmul.f32.gmra.mxu0 %v1078
          %v1080 = vpop.f32.mrf.mxu0
          %v1081 = vadd.f32 %v984, %v1080
          %v1082 = vand.u32 %v306, 4294901760
          %1083 = vmatmul.f32.gmra.mxu0 %v1082
          %v1084 = vpop.f32.mrf.mxu0
          %v1085 = vadd.f32 %v988, %v1084
          %v1086 = vand.u32 %v307, 4294901760
          %1087 = vmatmul.f32.gmra.mxu0 %v1086
          %v1088 = vpop.f32.mrf.mxu0
          %v1089 = vadd.f32 %v992, %v1088
          %v1090 = vand.u32 %v308, 4294901760
          %1091 = vmatmul.f32.gmra.mxu0 %v1090
          %v1092 = vpop.f32.mrf.mxu0
          %v1093 = vadd.f32 %v996, %v1092
          %v1094 = vand.u32 %v309, 4294901760
          %1095 = vmatmul.f32.gmra.mxu0 %v1094
          %v1096 = vpop.f32.mrf.mxu0
          %v1097 = vadd.f32 %v1000, %v1096
          %v1098 = vand.u32 %v310, 4294901760
          %1099 = vmatmul.f32.gmra.mxu0 %v1098
          %v1100 = vpop.f32.mrf.mxu0
          %v1101 = vadd.f32 %v1004, %v1100
          %v1102 = vand.u32 %v311, 4294901760
          %1103 = vmatmul.f32.gmra.mxu0 %v1102
          %v1104 = vpop.f32.mrf.mxu0
          %v1105 = vadd.f32 %v1008, %v1104
          %v1106 = vand.u32 %v312, 4294901760
          %1107 = vmatmul.f32.gmra.mxu0 %v1106
          %v1108 = vpop.f32.mrf.mxu0
          %v1109 = vadd.f32 %v1012, %v1108
          %v1110 = vand.u32 %v313, 4294901760
          %1111 = vmatmul.f32.gmra.mxu0 %v1110
          %v1112 = vpop.f32.mrf.mxu0
          %v1113 = vadd.f32 %v1016, %v1112
          %v1114 = vand.u32 %v314, 4294901760
          %1115 = vmatmul.f32.gmra.mxu0 %v1114
          %v1116 = vpop.f32.mrf.mxu0
          %v1117 = vadd.f32 %v1020, %v1116
          %v1118 = vand.u32 %v315, 4294901760
          %1119 = vmatmul.f32.gmra.mxu0 %v1118
          %v1120 = vpop.f32.mrf.mxu0
          %v1121 = vadd.f32 %v1024, %v1120
          %v1122 = vand.u32 %v316, 4294901760
          %1123 = vmatmul.f32.gmra.mxu0 %v1122
          %v1124 = vpop.f32.mrf.mxu0
          %v1125 = vadd.f32 %v1028, %v1124
          %v1126 = vand.u32 %v317, 4294901760
          %1127 = vmatmul.f32.gmra.mxu0 %v1126
          %v1128 = vpop.f32.mrf.mxu0
          %v1129 = vadd.f32 %v1032, %v1128
          %v1130 = vand.u32 %v318, 4294901760
          %1131 = vmatmul.f32.gmra.mxu0 %v1130
          %v1132 = vpop.f32.mrf.mxu0
          %v1133 = vadd.f32 %v1036, %v1132
          %v1134 = vand.u32 %v319, 4294901760
          %1135 = vmatmul.f32.gmra.mxu0 %v1134
          %v1136 = vpop.f32.mrf.mxu0
          %v1137 = vadd.f32 %v1040, %v1136
          %v1138 = vand.u32 %v320, 4294901760
          %1139 = vmatmul.f32.gmra.mxu0 %v1138
          %v1140 = vpop.f32.mrf.mxu0
          %v1141 = vadd.f32 %v1044, %v1140
          %1142 = vdwg.mxu0
          %1143 = vst [vmem:[#allocation3] sm:$0xff] %v1081
          %1144 = vst [vmem:[#allocation3 + $0x8] sm:$0xff] %v1085
          %1145 = vst [vmem:[#allocation3 + $0x10] sm:$0xff] %v1089
          %1146 = vst [vmem:[#allocation3 + $0x18] sm:$0xff] %v1093
          %1147 = vst [vmem:[#allocation3 + $0x20] sm:$0xff] %v1097
          %1148 = vst [vmem:[#allocation3 + $0x28] sm:$0xff] %v1101
          %1149 = vst [vmem:[#allocation3 + $0x30] sm:$0xff] %v1105
          %1150 = vst [vmem:[#allocation3 + $0x38] sm:$0xff] %v1109
          %1151 = vst [vmem:[#allocation3 + $0x40] sm:$0xff] %v1113
          %1152 = vst [vmem:[#allocation3 + $0x48] sm:$0xff] %v1117
          %1153 = vst [vmem:[#allocation3 + $0x50] sm:$0xff] %v1121
          %1154 = vst [vmem:[#allocation3 + $0x58] sm:$0xff] %v1125
          %1155 = vst [vmem:[#allocation3 + $0x60] sm:$0xff] %v1129
          %1156 = vst [vmem:[#allocation3 + $0x68] sm:$0xff] %v1133
          %1157 = vst [vmem:[#allocation3 + $0x70] sm:$0xff] %v1137
          %1158 = vst [vmem:[#allocation3 + $0x78] sm:$0xff] %v1141
        $region56: #{tpu_custom_call.1} parent=35 // pred_fallthru
          _
        %s1159 = smul.u32 %s23, 128
        %s1160 = scalar_lea.vmem [#allocation4], %s1159
        %v1161 = vld [vmem:[%s1160] sm:$0xff]
        %v1162 = vld [vmem:[%s1160 + $0x8] sm:$0xff]
        %v1163 = vld [vmem:[%s1160 + $0x10] sm:$0xff]
        %v1164 = vld [vmem:[%s1160 + $0x18] sm:$0xff]
        %v1165 = vld [vmem:[%s1160 + $0x20] sm:$0xff]
        %v1166 = vld [vmem:[%s1160 + $0x28] sm:$0xff]
        %v1167 = vld [vmem:[%s1160 + $0x30] sm:$0xff]
        %v1168 = vld [vmem:[%s1160 + $0x38] sm:$0xff]
        %v1169 = vld [vmem:[%s1160 + $0x40] sm:$0xff]
        %v1170 = vld [vmem:[%s1160 + $0x48] sm:$0xff]
        %v1171 = vld [vmem:[%s1160 + $0x50] sm:$0xff]
        %v1172 = vld [vmem:[%s1160 + $0x58] sm:$0xff]
        %v1173 = vld [vmem:[%s1160 + $0x60] sm:$0xff]
        %v1174 = vld [vmem:[%s1160 + $0x68] sm:$0xff]
        %v1175 = vld [vmem:[%s1160 + $0x70] sm:$0xff]
        %v1176 = vld [vmem:[%s1160 + $0x78] sm:$0xff]
        %v1177 = vld [vmem:[#allocation3] sm:$0xff]
        %v1178 = vld [vmem:[#allocation3 + $0x8] sm:$0xff]
        %v1179 = vld [vmem:[#allocation3 + $0x10] sm:$0xff]
        %v1180 = vld [vmem:[#allocation3 + $0x18] sm:$0xff]
        %v1181 = vld [vmem:[#allocation3 + $0x20] sm:$0xff]
        %v1182 = vld [vmem:[#allocation3 + $0x28] sm:$0xff]
        %v1183 = vld [vmem:[#allocation3 + $0x30] sm:$0xff]
        %v1184 = vld [vmem:[#allocation3 + $0x38] sm:$0xff]
        %v1185 = vld [vmem:[#allocation3 + $0x40] sm:$0xff]
        %v1186 = vld [vmem:[#allocation3 + $0x48] sm:$0xff]
        %v1187 = vld [vmem:[#allocation3 + $0x50] sm:$0xff]
        %v1188 = vld [vmem:[#allocation3 + $0x58] sm:$0xff]
        %v1189 = vld [vmem:[#allocation3 + $0x60] sm:$0xff]
        %v1190 = vld [vmem:[#allocation3 + $0x68] sm:$0xff]
        %v1191 = vld [vmem:[#allocation3 + $0x70] sm:$0xff]
        %v1192 = vld [vmem:[#allocation3 + $0x78] sm:$0xff]
        %v1193 = vld [vmem:[%s262] sm:$0x1]
        %v1195 = vperm.slane %v1193, 0
        %v1197 = vand.u32 %v1192, 4294901760
        %1198 = vmatpush.msra.mxu0 %v1197
        %v1199 = vand.u32 %v1191, 4294901760
        %1200 = vmatpush.msra.mxu0 %v1199
        %v1201 = vand.u32 %v1190, 4294901760
        %1202 = vmatpush.msra.mxu0 %v1201
        %v1203 = vand.u32 %v1189, 4294901760
        %1204 = vmatpush.msra.mxu0 %v1203
        %v1205 = vand.u32 %v1188, 4294901760
        %1206 = vmatpush.msra.mxu0 %v1205
        %v1207 = vand.u32 %v1187, 4294901760
        %1208 = vmatpush.msra.mxu0 %v1207
        %v1209 = vand.u32 %v1186, 4294901760
        %1210 = vmatpush.msra.mxu0 %v1209
        %v1211 = vand.u32 %v1185, 4294901760
        %1212 = vmatpush.msra.mxu0 %v1211
        %v1213 = vand.u32 %v1184, 4294901760
        %1214 = vmatpush.msra.mxu0 %v1213
        %v1215 = vand.u32 %v1183, 4294901760
        %1216 = vmatpush.msra.mxu0 %v1215
        %v1217 = vand.u32 %v1182, 4294901760
        %1218 = vmatpush.msra.mxu0 %v1217
        %v1219 = vand.u32 %v1181, 4294901760
        %1220 = vmatpush.msra.mxu0 %v1219
        %v1221 = vand.u32 %v1180, 4294901760
        %1222 = vmatpush.msra.mxu0 %v1221
        %v1223 = vand.u32 %v1179, 4294901760
        %1224 = vmatpush.msra.mxu0 %v1223
        %v1225 = vand.u32 %v1178, 4294901760
        %1226 = vmatpush.msra.mxu0 %v1225
        %v1227 = vand.u32 %v1177, 4294901760
        %1228 = vmatpush.msra.mxu0 %v1227
        %v1229 = vand.u32 %v1161, 4294901760
        %v1230 = vsub.f32 %v1161, %v1229
        %v1231 = vand.u32 %v1230, 4294901760
        %v1232 = vsub.f32 %v1230, %v1231
        %v1233 = vand.u32 %v1232, 4294901760
        %1234 = vmatmul.f32.gmra.mxu0 %v1233
        %v1235 = vpop.f32.mrf.mxu0
        %v1236 = vadd.f32 %v1195, %v1235
        %v1237 = vand.u32 %v1162, 4294901760
        %v1238 = vsub.f32 %v1162, %v1237
        %v1239 = vand.u32 %v1238, 4294901760
        %v1240 = vsub.f32 %v1238, %v1239
        %v1241 = vand.u32 %v1240, 4294901760
        %1242 = vmatmul.f32.gmra.mxu0 %v1241
        %v1243 = vpop.f32.mrf.mxu0
        %v1244 = vadd.f32 %v1195, %v1243
        %v1245 = vand.u32 %v1163, 4294901760
        %v1246 = vsub.f32 %v1163, %v1245
        %v1247 = vand.u32 %v1246, 4294901760
        %v1248 = vsub.f32 %v1246, %v1247
        %v1249 = vand.u32 %v1248, 4294901760
        %1250 = vmatmul.f32.gmra.mxu0 %v1249
        %v1251 = vpop.f32.mrf.mxu0
        %v1252 = vadd.f32 %v1195, %v1251
        %v1253 = vand.u32 %v1164, 4294901760
        %v1254 = vsub.f32 %v1164, %v1253
        %v1255 = vand.u32 %v1254, 4294901760
        %v1256 = vsub.f32 %v1254, %v1255
        %v1257 = vand.u32 %v1256, 4294901760
        %1258 = vmatmul.f32.gmra.mxu0 %v1257
        %v1259 = vpop.f32.mrf.mxu0
        %v1260 = vadd.f32 %v1195, %v1259
        %v1261 = vand.u32 %v1165, 4294901760
        %v1262 = vsub.f32 %v1165, %v1261
        %v1263 = vand.u32 %v1262, 4294901760
        %v1264 = vsub.f32 %v1262, %v1263
        %v1265 = vand.u32 %v1264, 4294901760
        %1266 = vmatmul.f32.gmra.mxu0 %v1265
        %v1267 = vpop.f32.mrf.mxu0
        %v1268 = vadd.f32 %v1195, %v1267
        %v1269 = vand.u32 %v1166, 4294901760
        %v1270 = vsub.f32 %v1166, %v1269
        %v1271 = vand.u32 %v1270, 4294901760
        %v1272 = vsub.f32 %v1270, %v1271
        %v1273 = vand.u32 %v1272, 4294901760
        %1274 = vmatmul.f32.gmra.mxu0 %v1273
        %v1275 = vpop.f32.mrf.mxu0
        %v1276 = vadd.f32 %v1195, %v1275
        %v1277 = vand.u32 %v1167, 4294901760
        %v1278 = vsub.f32 %v1167, %v1277
        %v1279 = vand.u32 %v1278, 4294901760
        %v1280 = vsub.f32 %v1278, %v1279
        %v1281 = vand.u32 %v1280, 4294901760
        %1282 = vmatmul.f32.gmra.mxu0 %v1281
        %v1283 = vpop.f32.mrf.mxu0
        %v1284 = vadd.f32 %v1195, %v1283
        %v1285 = vand.u32 %v1168, 4294901760
        %v1286 = vsub.f32 %v1168, %v1285
        %v1287 = vand.u32 %v1286, 4294901760
        %v1288 = vsub.f32 %v1286, %v1287
        %v1289 = vand.u32 %v1288, 4294901760
        %1290 = vmatmul.f32.gmra.mxu0 %v1289
        %v1291 = vpop.f32.mrf.mxu0
        %v1292 = vadd.f32 %v1195, %v1291
        %v1293 = vand.u32 %v1169, 4294901760
        %v1294 = vsub.f32 %v1169, %v1293
        %v1295 = vand.u32 %v1294, 4294901760
        %v1296 = vsub.f32 %v1294, %v1295
        %v1297 = vand.u32 %v1296, 4294901760
        %1298 = vmatmul.f32.gmra.mxu0 %v1297
        %v1299 = vpop.f32.mrf.mxu0
        %v1300 = vadd.f32 %v1195, %v1299
        %v1301 = vand.u32 %v1170, 4294901760
        %v1302 = vsub.f32 %v1170, %v1301
        %v1303 = vand.u32 %v1302, 4294901760
        %v1304 = vsub.f32 %v1302, %v1303
        %v1305 = vand.u32 %v1304, 4294901760
        %1306 = vmatmul.f32.gmra.mxu0 %v1305
        %v1307 = vpop.f32.mrf.mxu0
        %v1308 = vadd.f32 %v1195, %v1307
        %v1309 = vand.u32 %v1171, 4294901760
        %v1310 = vsub.f32 %v1171, %v1309
        %v1311 = vand.u32 %v1310, 4294901760
        %v1312 = vsub.f32 %v1310, %v1311
        %v1313 = vand.u32 %v1312, 4294901760
        %1314 = vmatmul.f32.gmra.mxu0 %v1313
        %v1315 = vpop.f32.mrf.mxu0
        %v1316 = vadd.f32 %v1195, %v1315
        %v1317 = vand.u32 %v1172, 4294901760
        %v1318 = vsub.f32 %v1172, %v1317
        %v1319 = vand.u32 %v1318, 4294901760
        %v1320 = vsub.f32 %v1318, %v1319
        %v1321 = vand.u32 %v1320, 4294901760
        %1322 = vmatmul.f32.gmra.mxu0 %v1321
        %v1323 = vpop.f32.mrf.mxu0
        %v1324 = vadd.f32 %v1195, %v1323
        %v1325 = vand.u32 %v1173, 4294901760
        %v1326 = vsub.f32 %v1173, %v1325
        %v1327 = vand.u32 %v1326, 4294901760
        %v1328 = vsub.f32 %v1326, %v1327
        %v1329 = vand.u32 %v1328, 4294901760
        %1330 = vmatmul.f32.gmra.mxu0 %v1329
        %v1331 = vpop.f32.mrf.mxu0
        %v1332 = vadd.f32 %v1195, %v1331
        %v1333 = vand.u32 %v1174, 4294901760
        %v1334 = vsub.f32 %v1174, %v1333
        %v1335 = vand.u32 %v1334, 4294901760
        %v1336 = vsub.f32 %v1334, %v1335
        %v1337 = vand.u32 %v1336, 4294901760
        %1338 = vmatmul.f32.gmra.mxu0 %v1337
        %v1339 = vpop.f32.mrf.mxu0
        %v1340 = vadd.f32 %v1195, %v1339
        %v1341 = vand.u32 %v1175, 4294901760
        %v1342 = vsub.f32 %v1175, %v1341
        %v1343 = vand.u32 %v1342, 4294901760
        %v1344 = vsub.f32 %v1342, %v1343
        %v1345 = vand.u32 %v1344, 4294901760
        %1346 = vmatmul.f32.gmra.mxu0 %v1345
        %v1347 = vpop.f32.mrf.mxu0
        %v1348 = vadd.f32 %v1195, %v1347
        %v1349 = vand.u32 %v1176, 4294901760
        %v1350 = vsub.f32 %v1176, %v1349
        %v1351 = vand.u32 %v1350, 4294901760
        %v1352 = vsub.f32 %v1350, %v1351
        %v1353 = vand.u32 %v1352, 4294901760
        %1354 = vmatmul.f32.gmra.mxu0 %v1353
        %v1355 = vpop.f32.mrf.mxu0
        %v1356 = vadd.f32 %v1195, %v1355
        %1357 = vdwg.mxu0
        %v1358 = vand.u32 %v1192, 4294901760
        %v1359 = vsub.f32 %v1192, %v1358
        %v1360 = vand.u32 %v1359, 4294901760
        %v1361 = vsub.f32 %v1359, %v1360
        %v1362 = vand.u32 %v1361, 4294901760
        %1363 = vmatpush.msra.mxu0 %v1362
        %v1364 = vand.u32 %v1191, 4294901760
        %v1365 = vsub.f32 %v1191, %v1364
        %v1366 = vand.u32 %v1365, 4294901760
        %v1367 = vsub.f32 %v1365, %v1366
        %v1368 = vand.u32 %v1367, 4294901760
        %1369 = vmatpush.msra.mxu0 %v1368
        %v1370 = vand.u32 %v1190, 4294901760
        %v1371 = vsub.f32 %v1190, %v1370
        %v1372 = vand.u32 %v1371, 4294901760
        %v1373 = vsub.f32 %v1371, %v1372
        %v1374 = vand.u32 %v1373, 4294901760
        %1375 = vmatpush.msra.mxu0 %v1374
        %v1376 = vand.u32 %v1189, 4294901760
        %v1377 = vsub.f32 %v1189, %v1376
        %v1378 = vand.u32 %v1377, 4294901760
        %v1379 = vsub.f32 %v1377, %v1378
        %v1380 = vand.u32 %v1379, 4294901760
        %1381 = vmatpush.msra.mxu0 %v1380
        %v1382 = vand.u32 %v1188, 4294901760
        %v1383 = vsub.f32 %v1188, %v1382
        %v1384 = vand.u32 %v1383, 4294901760
        %v1385 = vsub.f32 %v1383, %v1384
        %v1386 = vand.u32 %v1385, 4294901760
        %1387 = vmatpush.msra.mxu0 %v1386
        %v1388 = vand.u32 %v1187, 4294901760
        %v1389 = vsub.f32 %v1187, %v1388
        %v1390 = vand.u32 %v1389, 4294901760
        %v1391 = vsub.f32 %v1389, %v1390
        %v1392 = vand.u32 %v1391, 4294901760
        %1393 = vmatpush.msra.mxu0 %v1392
        %v1394 = vand.u32 %v1186, 4294901760
        %v1395 = vsub.f32 %v1186, %v1394
        %v1396 = vand.u32 %v1395, 4294901760
        %v1397 = vsub.f32 %v1395, %v1396
        %v1398 = vand.u32 %v1397, 4294901760
        %1399 = vmatpush.msra.mxu0 %v1398
        %v1400 = vand.u32 %v1185, 4294901760
        %v1401 = vsub.f32 %v1185, %v1400
        %v1402 = vand.u32 %v1401, 4294901760
        %v1403 = vsub.f32 %v1401, %v1402
        %v1404 = vand.u32 %v1403, 4294901760
        %1405 = vmatpush.msra.mxu0 %v1404
        %v1406 = vand.u32 %v1184, 4294901760
        %v1407 = vsub.f32 %v1184, %v1406
        %v1408 = vand.u32 %v1407, 4294901760
        %v1409 = vsub.f32 %v1407, %v1408
        %v1410 = vand.u32 %v1409, 4294901760
        %1411 = vmatpush.msra.mxu0 %v1410
        %v1412 = vand.u32 %v1183, 4294901760
        %v1413 = vsub.f32 %v1183, %v1412
        %v1414 = vand.u32 %v1413, 4294901760
        %v1415 = vsub.f32 %v1413, %v1414
        %v1416 = vand.u32 %v1415, 4294901760
        %1417 = vmatpush.msra.mxu0 %v1416
        %v1418 = vand.u32 %v1182, 4294901760
        %v1419 = vsub.f32 %v1182, %v1418
        %v1420 = vand.u32 %v1419, 4294901760
        %v1421 = vsub.f32 %v1419, %v1420
        %v1422 = vand.u32 %v1421, 4294901760
        %1423 = vmatpush.msra.mxu0 %v1422
        %v1424 = vand.u32 %v1181, 4294901760
        %v1425 = vsub.f32 %v1181, %v1424
        %v1426 = vand.u32 %v1425, 4294901760
        %v1427 = vsub.f32 %v1425, %v1426
        %v1428 = vand.u32 %v1427, 4294901760
        %1429 = vmatpush.msra.mxu0 %v1428
        %v1430 = vand.u32 %v1180, 4294901760
        %v1431 = vsub.f32 %v1180, %v1430
        %v1432 = vand.u32 %v1431, 4294901760
        %v1433 = vsub.f32 %v1431, %v1432
        %v1434 = vand.u32 %v1433, 4294901760
        %1435 = vmatpush.msra.mxu0 %v1434
        %v1436 = vand.u32 %v1179, 4294901760
        %v1437 = vsub.f32 %v1179, %v1436
        %v1438 = vand.u32 %v1437, 4294901760
        %v1439 = vsub.f32 %v1437, %v1438
        %v1440 = vand.u32 %v1439, 4294901760
        %1441 = vmatpush.msra.mxu0 %v1440
        %v1442 = vand.u32 %v1178, 4294901760
        %v1443 = vsub.f32 %v1178, %v1442
        %v1444 = vand.u32 %v1443, 4294901760
        %v1445 = vsub.f32 %v1443, %v1444
        %v1446 = vand.u32 %v1445, 4294901760
        %1447 = vmatpush.msra.mxu0 %v1446
        %v1448 = vand.u32 %v1177, 4294901760
        %v1449 = vsub.f32 %v1177, %v1448
        %v1450 = vand.u32 %v1449, 4294901760
        %v1451 = vsub.f32 %v1449, %v1450
        %v1452 = vand.u32 %v1451, 4294901760
        %1453 = vmatpush.msra.mxu0 %v1452
        %v1454 = vand.u32 %v1161, 4294901760
        %1455 = vmatmul.f32.gmra.mxu0 %v1454
        %v1456 = vpop.f32.mrf.mxu0
        %v1457 = vadd.f32 %v1236, %v1456
        %v1458 = vand.u32 %v1162, 4294901760
        %1459 = vmatmul.f32.gmra.mxu0 %v1458
        %v1460 = vpop.f32.mrf.mxu0
        %v1461 = vadd.f32 %v1244, %v1460
        %v1462 = vand.u32 %v1163, 4294901760
        %1463 = vmatmul.f32.gmra.mxu0 %v1462
        %v1464 = vpop.f32.mrf.mxu0
        %v1465 = vadd.f32 %v1252, %v1464
        %v1466 = vand.u32 %v1164, 4294901760
        %1467 = vmatmul.f32.gmra.mxu0 %v1466
        %v1468 = vpop.f32.mrf.mxu0
        %v1469 = vadd.f32 %v1260, %v1468
        %v1470 = vand.u32 %v1165, 4294901760
        %1471 = vmatmul.f32.gmra.mxu0 %v1470
        %v1472 = vpop.f32.mrf.mxu0
        %v1473 = vadd.f32 %v1268, %v1472
        %v1474 = vand.u32 %v1166, 4294901760
        %1475 = vmatmul.f32.gmra.mxu0 %v1474
        %v1476 = vpop.f32.mrf.mxu0
        %v1477 = vadd.f32 %v1276, %v1476
        %v1478 = vand.u32 %v1167, 4294901760
        %1479 = vmatmul.f32.gmra.mxu0 %v1478
        %v1480 = vpop.f32.mrf.mxu0
        %v1481 = vadd.f32 %v1284, %v1480
        %v1482 = vand.u32 %v1168, 4294901760
        %1483 = vmatmul.f32.gmra.mxu0 %v1482
        %v1484 = vpop.f32.mrf.mxu0
        %v1485 = vadd.f32 %v1292, %v1484
        %v1486 = vand.u32 %v1169, 4294901760
        %1487 = vmatmul.f32.gmra.mxu0 %v1486
        %v1488 = vpop.f32.mrf.mxu0
        %v1489 = vadd.f32 %v1300, %v1488
        %v1490 = vand.u32 %v1170, 4294901760
        %1491 = vmatmul.f32.gmra.mxu0 %v1490
        %v1492 = vpop.f32.mrf.mxu0
        %v1493 = vadd.f32 %v1308, %v1492
        %v1494 = vand.u32 %v1171, 4294901760
        %1495 = vmatmul.f32.gmra.mxu0 %v1494
        %v1496 = vpop.f32.mrf.mxu0
        %v1497 = vadd.f32 %v1316, %v1496
        %v1498 = vand.u32 %v1172, 4294901760
        %1499 = vmatmul.f32.gmra.mxu0 %v1498
        %v1500 = vpop.f32.mrf.mxu0
        %v1501 = vadd.f32 %v1324, %v1500
        %v1502 = vand.u32 %v1173, 4294901760
        %1503 = vmatmul.f32.gmra.mxu0 %v1502
        %v1504 = vpop.f32.mrf.mxu0
        %v1505 = vadd.f32 %v1332, %v1504
        %v1506 = vand.u32 %v1174, 4294901760
        %1507 = vmatmul.f32.gmra.mxu0 %v1506
        %v1508 = vpop.f32.mrf.mxu0
        %v1509 = vadd.f32 %v1340, %v1508
        %v1510 = vand.u32 %v1175, 4294901760
        %1511 = vmatmul.f32.gmra.mxu0 %v1510
        %v1512 = vpop.f32.mrf.mxu0
        %v1513 = vadd.f32 %v1348, %v1512
        %v1514 = vand.u32 %v1176, 4294901760
        %1515 = vmatmul.f32.gmra.mxu0 %v1514
        %v1516 = vpop.f32.mrf.mxu0
        %v1517 = vadd.f32 %v1356, %v1516
        %1518 = vdwg.mxu0
        %v1519 = vand.u32 %v1192, 4294901760
        %v1520 = vsub.f32 %v1192, %v1519
        %1521 = vmatpush.msra.mxu0 %v1520
        %v1522 = vand.u32 %v1191, 4294901760
        %v1523 = vsub.f32 %v1191, %v1522
        %1524 = vmatpush.msra.mxu0 %v1523
        %v1525 = vand.u32 %v1190, 4294901760
        %v1526 = vsub.f32 %v1190, %v1525
        %1527 = vmatpush.msra.mxu0 %v1526
        %v1528 = vand.u32 %v1189, 4294901760
        %v1529 = vsub.f32 %v1189, %v1528
        %1530 = vmatpush.msra.mxu0 %v1529
        %v1531 = vand.u32 %v1188, 4294901760
        %v1532 = vsub.f32 %v1188, %v1531
        %1533 = vmatpush.msra.mxu0 %v1532
        %v1534 = vand.u32 %v1187, 4294901760
        %v1535 = vsub.f32 %v1187, %v1534
        %1536 = vmatpush.msra.mxu0 %v1535
        %v1537 = vand.u32 %v1186, 4294901760
        %v1538 = vsub.f32 %v1186, %v1537
        %1539 = vmatpush.msra.mxu0 %v1538
        %v1540 = vand.u32 %v1185, 4294901760
        %v1541 = vsub.f32 %v1185, %v1540
        %1542 = vmatpush.msra.mxu0 %v1541
        %v1543 = vand.u32 %v1184, 4294901760
        %v1544 = vsub.f32 %v1184, %v1543
        %1545 = vmatpush.msra.mxu0 %v1544
        %v1546 = vand.u32 %v1183, 4294901760
        %v1547 = vsub.f32 %v1183, %v1546
        %1548 = vmatpush.msra.mxu0 %v1547
        %v1549 = vand.u32 %v1182, 4294901760
        %v1550 = vsub.f32 %v1182, %v1549
        %1551 = vmatpush.msra.mxu0 %v1550
        %v1552 = vand.u32 %v1181, 4294901760
        %v1553 = vsub.f32 %v1181, %v1552
        %1554 = vmatpush.msra.mxu0 %v1553
        %v1555 = vand.u32 %v1180, 4294901760
        %v1556 = vsub.f32 %v1180, %v1555
        %1557 = vmatpush.msra.mxu0 %v1556
        %v1558 = vand.u32 %v1179, 4294901760
        %v1559 = vsub.f32 %v1179, %v1558
        %1560 = vmatpush.msra.mxu0 %v1559
        %v1561 = vand.u32 %v1178, 4294901760
        %v1562 = vsub.f32 %v1178, %v1561
        %1563 = vmatpush.msra.mxu0 %v1562
        %v1564 = vand.u32 %v1177, 4294901760
        %v1565 = vsub.f32 %v1177, %v1564
        %1566 = vmatpush.msra.mxu0 %v1565
        %v1567 = vand.u32 %v1161, 4294901760
        %v1568 = vsub.f32 %v1161, %v1567
        %1569 = vmatmul.f32.gmra.mxu0 %v1568
        %v1570 = vpop.f32.mrf.mxu0
        %v1571 = vadd.f32 %v1457, %v1570
        %v1572 = vand.u32 %v1162, 4294901760
        %v1573 = vsub.f32 %v1162, %v1572
        %1574 = vmatmul.f32.gmra.mxu0 %v1573
        %v1575 = vpop.f32.mrf.mxu0
        %v1576 = vadd.f32 %v1461, %v1575
        %v1577 = vand.u32 %v1163, 4294901760
        %v1578 = vsub.f32 %v1163, %v1577
        %1579 = vmatmul.f32.gmra.mxu0 %v1578
        %v1580 = vpop.f32.mrf.mxu0
        %v1581 = vadd.f32 %v1465, %v1580
        %v1582 = vand.u32 %v1164, 4294901760
        %v1583 = vsub.f32 %v1164, %v1582
        %1584 = vmatmul.f32.gmra.mxu0 %v1583
        %v1585 = vpop.f32.mrf.mxu0
        %v1586 = vadd.f32 %v1469, %v1585
        %v1587 = vand.u32 %v1165, 4294901760
        %v1588 = vsub.f32 %v1165, %v1587
        %1589 = vmatmul.f32.gmra.mxu0 %v1588
        %v1590 = vpop.f32.mrf.mxu0
        %v1591 = vadd.f32 %v1473, %v1590
        %v1592 = vand.u32 %v1166, 4294901760
        %v1593 = vsub.f32 %v1166, %v1592
        %1594 = vmatmul.f32.gmra.mxu0 %v1593
        %v1595 = vpop.f32.mrf.mxu0
        %v1596 = vadd.f32 %v1477, %v1595
        %v1597 = vand.u32 %v1167, 4294901760
        %v1598 = vsub.f32 %v1167, %v1597
        %1599 = vmatmul.f32.gmra.mxu0 %v1598
        %v1600 = vpop.f32.mrf.mxu0
        %v1601 = vadd.f32 %v1481, %v1600
        %v1602 = vand.u32 %v1168, 4294901760
        %v1603 = vsub.f32 %v1168, %v1602
        %1604 = vmatmul.f32.gmra.mxu0 %v1603
        %v1605 = vpop.f32.mrf.mxu0
        %v1606 = vadd.f32 %v1485, %v1605
        %v1607 = vand.u32 %v1169, 4294901760
        %v1608 = vsub.f32 %v1169, %v1607
        %1609 = vmatmul.f32.gmra.mxu0 %v1608
        %v1610 = vpop.f32.mrf.mxu0
        %v1611 = vadd.f32 %v1489, %v1610
        %v1612 = vand.u32 %v1170, 4294901760
        %v1613 = vsub.f32 %v1170, %v1612
        %1614 = vmatmul.f32.gmra.mxu0 %v1613
        %v1615 = vpop.f32.mrf.mxu0
        %v1616 = vadd.f32 %v1493, %v1615
        %v1617 = vand.u32 %v1171, 4294901760
        %v1618 = vsub.f32 %v1171, %v1617
        %1619 = vmatmul.f32.gmra.mxu0 %v1618
        %v1620 = vpop.f32.mrf.mxu0
        %v1621 = vadd.f32 %v1497, %v1620
        %v1622 = vand.u32 %v1172, 4294901760
        %v1623 = vsub.f32 %v1172, %v1622
        %1624 = vmatmul.f32.gmra.mxu0 %v1623
        %v1625 = vpop.f32.mrf.mxu0
        %v1626 = vadd.f32 %v1501, %v1625
        %v1627 = vand.u32 %v1173, 4294901760
        %v1628 = vsub.f32 %v1173, %v1627
        %1629 = vmatmul.f32.gmra.mxu0 %v1628
        %v1630 = vpop.f32.mrf.mxu0
        %v1631 = vadd.f32 %v1505, %v1630
        %v1632 = vand.u32 %v1174, 4294901760
        %v1633 = vsub.f32 %v1174, %v1632
        %1634 = vmatmul.f32.gmra.mxu0 %v1633
        %v1635 = vpop.f32.mrf.mxu0
        %v1636 = vadd.f32 %v1509, %v1635
        %v1637 = vand.u32 %v1175, 4294901760
        %v1638 = vsub.f32 %v1175, %v1637
        %1639 = vmatmul.f32.gmra.mxu0 %v1638
        %v1640 = vpop.f32.mrf.mxu0
        %v1641 = vadd.f32 %v1513, %v1640
        %v1642 = vand.u32 %v1176, 4294901760
        %v1643 = vsub.f32 %v1176, %v1642
        %1644 = vmatmul.f32.gmra.mxu0 %v1643
        %v1645 = vpop.f32.mrf.mxu0
        %v1646 = vadd.f32 %v1517, %v1645
        %1647 = vdwg.mxu0
        %v1648 = vand.u32 %v1192, 4294901760
        %1649 = vmatpush.msra.mxu0 %v1648
        %v1650 = vand.u32 %v1191, 4294901760
        %1651 = vmatpush.msra.mxu0 %v1650
        %v1652 = vand.u32 %v1190, 4294901760
        %1653 = vmatpush.msra.mxu0 %v1652
        %v1654 = vand.u32 %v1189, 4294901760
        %1655 = vmatpush.msra.mxu0 %v1654
        %v1656 = vand.u32 %v1188, 4294901760
        %1657 = vmatpush.msra.mxu0 %v1656
        %v1658 = vand.u32 %v1187, 4294901760
        %1659 = vmatpush.msra.mxu0 %v1658
        %v1660 = vand.u32 %v1186, 4294901760
        %1661 = vmatpush.msra.mxu0 %v1660
        %v1662 = vand.u32 %v1185, 4294901760
        %1663 = vmatpush.msra.mxu0 %v1662
        %v1664 = vand.u32 %v1184, 4294901760
        %1665 = vmatpush.msra.mxu0 %v1664
        %v1666 = vand.u32 %v1183, 4294901760
        %1667 = vmatpush.msra.mxu0 %v1666
        %v1668 = vand.u32 %v1182, 4294901760
        %1669 = vmatpush.msra.mxu0 %v1668
        %v1670 = vand.u32 %v1181, 4294901760
        %1671 = vmatpush.msra.mxu0 %v1670
        %v1672 = vand.u32 %v1180, 4294901760
        %1673 = vmatpush.msra.mxu0 %v1672
        %v1674 = vand.u32 %v1179, 4294901760
        %1675 = vmatpush.msra.mxu0 %v1674
        %v1676 = vand.u32 %v1178, 4294901760
        %1677 = vmatpush.msra.mxu0 %v1676
        %v1678 = vand.u32 %v1177, 4294901760
        %1679 = vmatpush.msra.mxu0 %v1678
        %v1680 = vand.u32 %v1161, 4294901760
        %v1681 = vsub.f32 %v1161, %v1680
        %v1682 = vand.u32 %v1681, 4294901760
        %1683 = vmatmul.f32.gmra.mxu0 %v1682
        %v1684 = vpop.f32.mrf.mxu0
        %v1685 = vadd.f32 %v1571, %v1684
        %v1686 = vand.u32 %v1162, 4294901760
        %v1687 = vsub.f32 %v1162, %v1686
        %v1688 = vand.u32 %v1687, 4294901760
        %1689 = vmatmul.f32.gmra.mxu0 %v1688
        %v1690 = vpop.f32.mrf.mxu0
        %v1691 = vadd.f32 %v1576, %v1690
        %v1692 = vand.u32 %v1163, 4294901760
        %v1693 = vsub.f32 %v1163, %v1692
        %v1694 = vand.u32 %v1693, 4294901760
        %1695 = vmatmul.f32.gmra.mxu0 %v1694
        %v1696 = vpop.f32.mrf.mxu0
        %v1697 = vadd.f32 %v1581, %v1696
        %v1698 = vand.u32 %v1164, 4294901760
        %v1699 = vsub.f32 %v1164, %v1698
        %v1700 = vand.u32 %v1699, 4294901760
        %1701 = vmatmul.f32.gmra.mxu0 %v1700
        %v1702 = vpop.f32.mrf.mxu0
        %v1703 = vadd.f32 %v1586, %v1702
        %v1704 = vand.u32 %v1165, 4294901760
        %v1705 = vsub.f32 %v1165, %v1704
        %v1706 = vand.u32 %v1705, 4294901760
        %1707 = vmatmul.f32.gmra.mxu0 %v1706
        %v1708 = vpop.f32.mrf.mxu0
        %v1709 = vadd.f32 %v1591, %v1708
        %v1710 = vand.u32 %v1166, 4294901760
        %v1711 = vsub.f32 %v1166, %v1710
        %v1712 = vand.u32 %v1711, 4294901760
        %1713 = vmatmul.f32.gmra.mxu0 %v1712
        %v1714 = vpop.f32.mrf.mxu0
        %v1715 = vadd.f32 %v1596, %v1714
        %v1716 = vand.u32 %v1167, 4294901760
        %v1717 = vsub.f32 %v1167, %v1716
        %v1718 = vand.u32 %v1717, 4294901760
        %1719 = vmatmul.f32.gmra.mxu0 %v1718
        %v1720 = vpop.f32.mrf.mxu0
        %v1721 = vadd.f32 %v1601, %v1720
        %v1722 = vand.u32 %v1168, 4294901760
        %v1723 = vsub.f32 %v1168, %v1722
        %v1724 = vand.u32 %v1723, 4294901760
        %1725 = vmatmul.f32.gmra.mxu0 %v1724
        %v1726 = vpop.f32.mrf.mxu0
        %v1727 = vadd.f32 %v1606, %v1726
        %v1728 = vand.u32 %v1169, 4294901760
        %v1729 = vsub.f32 %v1169, %v1728
        %v1730 = vand.u32 %v1729, 4294901760
        %1731 = vmatmul.f32.gmra.mxu0 %v1730
        %v1732 = vpop.f32.mrf.mxu0
        %v1733 = vadd.f32 %v1611, %v1732
        %v1734 = vand.u32 %v1170, 4294901760
        %v1735 = vsub.f32 %v1170, %v1734
        %v1736 = vand.u32 %v1735, 4294901760
        %1737 = vmatmul.f32.gmra.mxu0 %v1736
        %v1738 = vpop.f32.mrf.mxu0
        %v1739 = vadd.f32 %v1616, %v1738
        %v1740 = vand.u32 %v1171, 4294901760
        %v1741 = vsub.f32 %v1171, %v1740
        %v1742 = vand.u32 %v1741, 4294901760
        %1743 = vmatmul.f32.gmra.mxu0 %v1742
        %v1744 = vpop.f32.mrf.mxu0
        %v1745 = vadd.f32 %v1621, %v1744
        %v1746 = vand.u32 %v1172, 4294901760
        %v1747 = vsub.f32 %v1172, %v1746
        %v1748 = vand.u32 %v1747, 4294901760
        %1749 = vmatmul.f32.gmra.mxu0 %v1748
        %v1750 = vpop.f32.mrf.mxu0
        %v1751 = vadd.f32 %v1626, %v1750
        %v1752 = vand.u32 %v1173, 4294901760
        %v1753 = vsub.f32 %v1173, %v1752
        %v1754 = vand.u32 %v1753, 4294901760
        %1755 = vmatmul.f32.gmra.mxu0 %v1754
        %v1756 = vpop.f32.mrf.mxu0
        %v1757 = vadd.f32 %v1631, %v1756
        %v1758 = vand.u32 %v1174, 4294901760
        %v1759 = vsub.f32 %v1174, %v1758
        %v1760 = vand.u32 %v1759, 4294901760
        %1761 = vmatmul.f32.gmra.mxu0 %v1760
        %v1762 = vpop.f32.mrf.mxu0
        %v1763 = vadd.f32 %v1636, %v1762
        %v1764 = vand.u32 %v1175, 4294901760
        %v1765 = vsub.f32 %v1175, %v1764
        %v1766 = vand.u32 %v1765, 4294901760
        %1767 = vmatmul.f32.gmra.mxu0 %v1766
        %v1768 = vpop.f32.mrf.mxu0
        %v1769 = vadd.f32 %v1641, %v1768
        %v1770 = vand.u32 %v1176, 4294901760
        %v1771 = vsub.f32 %v1176, %v1770
        %v1772 = vand.u32 %v1771, 4294901760
        %1773 = vmatmul.f32.gmra.mxu0 %v1772
        %v1774 = vpop.f32.mrf.mxu0
        %v1775 = vadd.f32 %v1646, %v1774
        %1776 = vdwg.mxu0
        %v1777 = vand.u32 %v1192, 4294901760
        %v1778 = vsub.f32 %v1192, %v1777
        %v1779 = vand.u32 %v1778, 4294901760
        %1780 = vmatpush.msra.mxu0 %v1779
        %v1781 = vand.u32 %v1191, 4294901760
        %v1782 = vsub.f32 %v1191, %v1781
        %v1783 = vand.u32 %v1782, 4294901760
        %1784 = vmatpush.msra.mxu0 %v1783
        %v1785 = vand.u32 %v1190, 4294901760
        %v1786 = vsub.f32 %v1190, %v1785
        %v1787 = vand.u32 %v1786, 4294901760
        %1788 = vmatpush.msra.mxu0 %v1787
        %v1789 = vand.u32 %v1189, 4294901760
        %v1790 = vsub.f32 %v1189, %v1789
        %v1791 = vand.u32 %v1790, 4294901760
        %1792 = vmatpush.msra.mxu0 %v1791
        %v1793 = vand.u32 %v1188, 4294901760
        %v1794 = vsub.f32 %v1188, %v1793
        %v1795 = vand.u32 %v1794, 4294901760
        %1796 = vmatpush.msra.mxu0 %v1795
        %v1797 = vand.u32 %v1187, 4294901760
        %v1798 = vsub.f32 %v1187, %v1797
        %v1799 = vand.u32 %v1798, 4294901760
        %1800 = vmatpush.msra.mxu0 %v1799
        %v1801 = vand.u32 %v1186, 4294901760
        %v1802 = vsub.f32 %v1186, %v1801
        %v1803 = vand.u32 %v1802, 4294901760
        %1804 = vmatpush.msra.mxu0 %v1803
        %v1805 = vand.u32 %v1185, 4294901760
        %v1806 = vsub.f32 %v1185, %v1805
        %v1807 = vand.u32 %v1806, 4294901760
        %1808 = vmatpush.msra.mxu0 %v1807
        %v1809 = vand.u32 %v1184, 4294901760
        %v1810 = vsub.f32 %v1184, %v1809
        %v1811 = vand.u32 %v1810, 4294901760
        %1812 = vmatpush.msra.mxu0 %v1811
        %v1813 = vand.u32 %v1183, 4294901760
        %v1814 = vsub.f32 %v1183, %v1813
        %v1815 = vand.u32 %v1814, 4294901760
        %1816 = vmatpush.msra.mxu0 %v1815
        %v1817 = vand.u32 %v1182, 4294901760
        %v1818 = vsub.f32 %v1182, %v1817
        %v1819 = vand.u32 %v1818, 4294901760
        %1820 = vmatpush.msra.mxu0 %v1819
        %v1821 = vand.u32 %v1181, 4294901760
        %v1822 = vsub.f32 %v1181, %v1821
        %v1823 = vand.u32 %v1822, 4294901760
        %1824 = vmatpush.msra.mxu0 %v1823
        %v1825 = vand.u32 %v1180, 4294901760
        %v1826 = vsub.f32 %v1180, %v1825
        %v1827 = vand.u32 %v1826, 4294901760
        %1828 = vmatpush.msra.mxu0 %v1827
        %v1829 = vand.u32 %v1179, 4294901760
        %v1830 = vsub.f32 %v1179, %v1829
        %v1831 = vand.u32 %v1830, 4294901760
        %1832 = vmatpush.msra.mxu0 %v1831
        %v1833 = vand.u32 %v1178, 4294901760
        %v1834 = vsub.f32 %v1178, %v1833
        %v1835 = vand.u32 %v1834, 4294901760
        %1836 = vmatpush.msra.mxu0 %v1835
        %v1837 = vand.u32 %v1177, 4294901760
        %v1838 = vsub.f32 %v1177, %v1837
        %v1839 = vand.u32 %v1838, 4294901760
        %1840 = vmatpush.msra.mxu0 %v1839
        %v1841 = vand.u32 %v1161, 4294901760
        %1842 = vmatmul.f32.gmra.mxu0 %v1841
        %v1843 = vpop.f32.mrf.mxu0
        %v1844 = vadd.f32 %v1685, %v1843
        %v1845 = vand.u32 %v1162, 4294901760
        %1846 = vmatmul.f32.gmra.mxu0 %v1845
        %v1847 = vpop.f32.mrf.mxu0
        %v1848 = vadd.f32 %v1691, %v1847
        %v1849 = vand.u32 %v1163, 4294901760
        %1850 = vmatmul.f32.gmra.mxu0 %v1849
        %v1851 = vpop.f32.mrf.mxu0
        %v1852 = vadd.f32 %v1697, %v1851
        %v1853 = vand.u32 %v1164, 4294901760
        %1854 = vmatmul.f32.gmra.mxu0 %v1853
        %v1855 = vpop.f32.mrf.mxu0
        %v1856 = vadd.f32 %v1703, %v1855
        %v1857 = vand.u32 %v1165, 4294901760
        %1858 = vmatmul.f32.gmra.mxu0 %v1857
        %v1859 = vpop.f32.mrf.mxu0
        %v1860 = vadd.f32 %v1709, %v1859
        %v1861 = vand.u32 %v1166, 4294901760
        %1862 = vmatmul.f32.gmra.mxu0 %v1861
        %v1863 = vpop.f32.mrf.mxu0
        %v1864 = vadd.f32 %v1715, %v1863
        %v1865 = vand.u32 %v1167, 4294901760
        %1866 = vmatmul.f32.gmra.mxu0 %v1865
        %v1867 = vpop.f32.mrf.mxu0
        %v1868 = vadd.f32 %v1721, %v1867
        %v1869 = vand.u32 %v1168, 4294901760
        %1870 = vmatmul.f32.gmra.mxu0 %v1869
        %v1871 = vpop.f32.mrf.mxu0
        %v1872 = vadd.f32 %v1727, %v1871
        %v1873 = vand.u32 %v1169, 4294901760
        %1874 = vmatmul.f32.gmra.mxu0 %v1873
        %v1875 = vpop.f32.mrf.mxu0
        %v1876 = vadd.f32 %v1733, %v1875
        %v1877 = vand.u32 %v1170, 4294901760
        %1878 = vmatmul.f32.gmra.mxu0 %v1877
        %v1879 = vpop.f32.mrf.mxu0
        %v1880 = vadd.f32 %v1739, %v1879
        %v1881 = vand.u32 %v1171, 4294901760
        %1882 = vmatmul.f32.gmra.mxu0 %v1881
        %v1883 = vpop.f32.mrf.mxu0
        %v1884 = vadd.f32 %v1745, %v1883
        %v1885 = vand.u32 %v1172, 4294901760
        %1886 = vmatmul.f32.gmra.mxu0 %v1885
        %v1887 = vpop.f32.mrf.mxu0
        %v1888 = vadd.f32 %v1751, %v1887
        %v1889 = vand.u32 %v1173, 4294901760
        %1890 = vmatmul.f32.gmra.mxu0 %v1889
        %v1891 = vpop.f32.mrf.mxu0
        %v1892 = vadd.f32 %v1757, %v1891
        %v1893 = vand.u32 %v1174, 4294901760
        %1894 = vmatmul.f32.gmra.mxu0 %v1893
        %v1895 = vpop.f32.mrf.mxu0
        %v1896 = vadd.f32 %v1763, %v1895
        %v1897 = vand.u32 %v1175, 4294901760
        %1898 = vmatmul.f32.gmra.mxu0 %v1897
        %v1899 = vpop.f32.mrf.mxu0
        %v1900 = vadd.f32 %v1769, %v1899
        %v1901 = vand.u32 %v1176, 4294901760
        %1902 = vmatmul.f32.gmra.mxu0 %v1901
        %v1903 = vpop.f32.mrf.mxu0
        %v1904 = vadd.f32 %v1775, %v1903
        %1905 = vdwg.mxu0
        %v1906 = vand.u32 %v1192, 4294901760
        %1907 = vmatpush.msra.mxu0 %v1906
        %v1908 = vand.u32 %v1191, 4294901760
        %1909 = vmatpush.msra.mxu0 %v1908
        %v1910 = vand.u32 %v1190, 4294901760
        %1911 = vmatpush.msra.mxu0 %v1910
        %v1912 = vand.u32 %v1189, 4294901760
        %1913 = vmatpush.msra.mxu0 %v1912
        %v1914 = vand.u32 %v1188, 4294901760
        %1915 = vmatpush.msra.mxu0 %v1914
        %v1916 = vand.u32 %v1187, 4294901760
        %1917 = vmatpush.msra.mxu0 %v1916
        %v1918 = vand.u32 %v1186, 4294901760
        %1919 = vmatpush.msra.mxu0 %v1918
        %v1920 = vand.u32 %v1185, 4294901760
        %1921 = vmatpush.msra.mxu0 %v1920
        %v1922 = vand.u32 %v1184, 4294901760
        %1923 = vmatpush.msra.mxu0 %v1922
        %v1924 = vand.u32 %v1183, 4294901760
        %1925 = vmatpush.msra.mxu0 %v1924
        %v1926 = vand.u32 %v1182, 4294901760
        %1927 = vmatpush.msra.mxu0 %v1926
        %v1928 = vand.u32 %v1181, 4294901760
        %1929 = vmatpush.msra.mxu0 %v1928
        %v1930 = vand.u32 %v1180, 4294901760
        %1931 = vmatpush.msra.mxu0 %v1930
        %v1932 = vand.u32 %v1179, 4294901760
        %1933 = vmatpush.msra.mxu0 %v1932
        %v1934 = vand.u32 %v1178, 4294901760
        %1935 = vmatpush.msra.mxu0 %v1934
        %v1936 = vand.u32 %v1177, 4294901760
        %1937 = vmatpush.msra.mxu0 %v1936
        %v1938 = vand.u32 %v1161, 4294901760
        %1939 = vmatmul.f32.gmra.mxu0 %v1938
        %v1940 = vpop.f32.mrf.mxu0
        %v1941 = vadd.f32 %v1844, %v1940
        %v1942 = vand.u32 %v1162, 4294901760
        %1943 = vmatmul.f32.gmra.mxu0 %v1942
        %v1944 = vpop.f32.mrf.mxu0
        %v1945 = vadd.f32 %v1848, %v1944
        %v1946 = vand.u32 %v1163, 4294901760
        %1947 = vmatmul.f32.gmra.mxu0 %v1946
        %v1948 = vpop.f32.mrf.mxu0
        %v1949 = vadd.f32 %v1852, %v1948
        %v1950 = vand.u32 %v1164, 4294901760
        %1951 = vmatmul.f32.gmra.mxu0 %v1950
        %v1952 = vpop.f32.mrf.mxu0
        %v1953 = vadd.f32 %v1856, %v1952
        %v1954 = vand.u32 %v1165, 4294901760
        %1955 = vmatmul.f32.gmra.mxu0 %v1954
        %v1956 = vpop.f32.mrf.mxu0
        %v1957 = vadd.f32 %v1860, %v1956
        %v1958 = vand.u32 %v1166, 4294901760
        %1959 = vmatmul.f32.gmra.mxu0 %v1958
        %v1960 = vpop.f32.mrf.mxu0
        %v1961 = vadd.f32 %v1864, %v1960
        %v1962 = vand.u32 %v1167, 4294901760
        %1963 = vmatmul.f32.gmra.mxu0 %v1962
        %v1964 = vpop.f32.mrf.mxu0
        %v1965 = vadd.f32 %v1868, %v1964
        %v1966 = vand.u32 %v1168, 4294901760
        %1967 = vmatmul.f32.gmra.mxu0 %v1966
        %v1968 = vpop.f32.mrf.mxu0
        %v1969 = vadd.f32 %v1872, %v1968
        %v1970 = vand.u32 %v1169, 4294901760
        %1971 = vmatmul.f32.gmra.mxu0 %v1970
        %v1972 = vpop.f32.mrf.mxu0
        %v1973 = vadd.f32 %v1876, %v1972
        %v1974 = vand.u32 %v1170, 4294901760
        %1975 = vmatmul.f32.gmra.mxu0 %v1974
        %v1976 = vpop.f32.mrf.mxu0
        %v1977 = vadd.f32 %v1880, %v1976
        %v1978 = vand.u32 %v1171, 4294901760
        %1979 = vmatmul.f32.gmra.mxu0 %v1978
        %v1980 = vpop.f32.mrf.mxu0
        %v1981 = vadd.f32 %v1884, %v1980
        %v1982 = vand.u32 %v1172, 4294901760
        %1983 = vmatmul.f32.gmra.mxu0 %v1982
        %v1984 = vpop.f32.mrf.mxu0
        %v1985 = vadd.f32 %v1888, %v1984
        %v1986 = vand.u32 %v1173, 4294901760
        %1987 = vmatmul.f32.gmra.mxu0 %v1986
        %v1988 = vpop.f32.mrf.mxu0
        %v1989 = vadd.f32 %v1892, %v1988
        %v1990 = vand.u32 %v1174, 4294901760
        %1991 = vmatmul.f32.gmra.mxu0 %v1990
        %v1992 = vpop.f32.mrf.mxu0
        %v1993 = vadd.f32 %v1896, %v1992
        %v1994 = vand.u32 %v1175, 4294901760
        %1995 = vmatmul.f32.gmra.mxu0 %v1994
        %v1996 = vpop.f32.mrf.mxu0
        %v1997 = vadd.f32 %v1900, %v1996
        %v1998 = vand.u32 %v1176, 4294901760
        %1999 = vmatmul.f32.gmra.mxu0 %v1998
        %v2000 = vpop.f32.mrf.mxu0
        %v2001 = vadd.f32 %v1904, %v2000
        %2002 = vdwg.mxu0
        %p2003 = scmp.ne.s32.totalorder %s22, 1
        // Predicated region
        $region57: #{tpu_custom_call.1} parent=35 // pred_check
          %p2004 = pneg %p2003
        $region58: #{tpu_custom_call.1} parent=35 // pred_check_branch
          %2006 = sbr.rel (%p2004) target = $region60
        $region59: #{tpu_custom_call.1} parent=35 // pred_region
          %v2007 = vmax.f32 %v1941, 0.0
          %v2008 = vmax.f32 %v1945, 0.0
          %v2009 = vmax.f32 %v1949, 0.0
          %v2010 = vmax.f32 %v1953, 0.0
          %v2011 = vmax.f32 %v1957, 0.0
          %v2012 = vmax.f32 %v1961, 0.0
          %v2013 = vmax.f32 %v1965, 0.0
          %v2014 = vmax.f32 %v1969, 0.0
          %v2015 = vmax.f32 %v1973, 0.0
          %v2016 = vmax.f32 %v1977, 0.0
          %v2017 = vmax.f32 %v1981, 0.0
          %v2018 = vmax.f32 %v1985, 0.0
          %v2019 = vmax.f32 %v1989, 0.0
          %v2020 = vmax.f32 %v1993, 0.0
          %v2021 = vmax.f32 %v1997, 0.0
          %v2022 = vmax.f32 %v2001, 0.0
          %s2023 = scalar_lea.vmem [#allocation2], %s1159
          %2024 = vst [vmem:[%s2023] sm:$0xff] %v2007
          %2025 = vst [vmem:[%s2023 + $0x8] sm:$0xff] %v2008
          %2026 = vst [vmem:[%s2023 + $0x10] sm:$0xff] %v2009
          %2027 = vst [vmem:[%s2023 + $0x18] sm:$0xff] %v2010
          %2028 = vst [vmem:[%s2023 + $0x20] sm:$0xff] %v2011
          %2029 = vst [vmem:[%s2023 + $0x28] sm:$0xff] %v2012
          %2030 = vst [vmem:[%s2023 + $0x30] sm:$0xff] %v2013
          %2031 = vst [vmem:[%s2023 + $0x38] sm:$0xff] %v2014
          %2032 = vst [vmem:[%s2023 + $0x40] sm:$0xff] %v2015
          %2033 = vst [vmem:[%s2023 + $0x48] sm:$0xff] %v2016
          %2034 = vst [vmem:[%s2023 + $0x50] sm:$0xff] %v2017
          %2035 = vst [vmem:[%s2023 + $0x58] sm:$0xff] %v2018
          %2036 = vst [vmem:[%s2023 + $0x60] sm:$0xff] %v2019
          %2037 = vst [vmem:[%s2023 + $0x68] sm:$0xff] %v2020
          %2038 = vst [vmem:[%s2023 + $0x70] sm:$0xff] %v2021
          %2039 = vst [vmem:[%s2023 + $0x78] sm:$0xff] %v2022
        $region60: #{tpu_custom_call.1} parent=35 // pred_fallthru
          _
        // Predicated region
        $region61: #{tpu_custom_call.1} parent=35 // pred_check
          %p2040 = pneg %p263
        $region62: #{tpu_custom_call.1} parent=35 // pred_check_branch
          %2042 = sbr.rel (%p2040) target = $region64
        $region63: #{tpu_custom_call.1} parent=35 // pred_region
          %s2043 = scalar_lea.vmem [#allocation10], %s1159
          %2044 = vst [vmem:[%s2043] sm:$0xff] %v1941
          %2045 = vst [vmem:[%s2043 + $0x8] sm:$0xff] %v1945
          %2046 = vst [vmem:[%s2043 + $0x10] sm:$0xff] %v1949
          %2047 = vst [vmem:[%s2043 + $0x18] sm:$0xff] %v1953
          %2048 = vst [vmem:[%s2043 + $0x20] sm:$0xff] %v1957
          %2049 = vst [vmem:[%s2043 + $0x28] sm:$0xff] %v1961
          %2050 = vst [vmem:[%s2043 + $0x30] sm:$0xff] %v1965
          %2051 = vst [vmem:[%s2043 + $0x38] sm:$0xff] %v1969
          %2052 = vst [vmem:[%s2043 + $0x40] sm:$0xff] %v1973
          %2053 = vst [vmem:[%s2043 + $0x48] sm:$0xff] %v1977
          %2054 = vst [vmem:[%s2043 + $0x50] sm:$0xff] %v1981
          %2055 = vst [vmem:[%s2043 + $0x58] sm:$0xff] %v1985
          %2056 = vst [vmem:[%s2043 + $0x60] sm:$0xff] %v1989
          %2057 = vst [vmem:[%s2043 + $0x68] sm:$0xff] %v1993
          %2058 = vst [vmem:[%s2043 + $0x70] sm:$0xff] %v1997
          %2059 = vst [vmem:[%s2043 + $0x78] sm:$0xff] %v2001
        $region64: #{tpu_custom_call.1} parent=35 // pred_fallthru
          _
        // Predicated region
        $region65: #{tpu_custom_call.1} parent=35 // pred_check
          %p2060 = pneg %p137
        $region66: #{tpu_custom_call.1} parent=35 // pred_check_branch
          %2062 = sbr.rel (%p2060) target = $region68
        $region67: #{tpu_custom_call.1} parent=35 // pred_region
          %2064 = vsyncadd [#allocation6], 0
          %s2065 = sshll.u32 [#allocation10], 4
          %s2066 = int_to_ptr.vmem [resolvable:$true] %s2065
          %s2067 = sshll.u32 %s4, 4
          %s2068 = int_to_ptr.hbm [resolvable:$true] %s2067
          %2073 = dma.vmem_to_hbm [thread:$0]  %s2066, 2048, %s2068, [#allocation6], 128, 128, 8
        $region68: #{tpu_custom_call.1} parent=35 // pred_fallthru
          _
        // Predicated region
        $region69: #{tpu_custom_call.1} parent=35 // pred_check
          %p2074 = pneg %p137
        $region70: #{tpu_custom_call.1} parent=35 // pred_check_branch
          %2076 = sbr.rel (%p2074) target = $region72
        $region71: #{tpu_custom_call.1} parent=35 // pred_region
          %2078 = dma.done [#allocation6], 2048
        $region72: #{tpu_custom_call.1} parent=35 // pred_fallthru
          _
      $region36: #{tpu_custom_call.1} parent=5 // pred_fallthru
        _
      %p2079 = scmp.le.s32.totalorder 2, %s13
      // Predicated region
      $region73: #{tpu_custom_call.1} parent=5 // pred_check
        %p2080 = pneg %p2079
      $region74: #{tpu_custom_call.1} parent=5 // pred_check_branch
        %2082 = sbr.rel (%p2080) target = $region76
      $region75: #{tpu_custom_call.1} parent=5 // pred_region
        %s2083 = ssub.s32 %s13, 2
      $region76: #{tpu_custom_call.1} parent=5 // pred_fallthru
        _
    $region6: #{tpu_custom_call.1} parent=1 // loop_footer
      %s17 = sadd.s32 1, %s13
    $region7: #{tpu_custom_call.1} parent=1 // loop_footer_branch
      %12 = sbr.rel target = $region3
    $region8: #{tpu_custom_call.1} parent=1 // loop_exit
      _
    %2084 = vsyncpa [#allocation5], 1
    %s2085 = scalar_lea.sflag [#allocation5], 1
    %2086 = vsyncpa %s2085, 1
    %2087 = vsyncpa [#allocation8], 1
    %2088 = vsyncpa [#allocation6], 1
    %s2089 = scalar_lea.sflag [#allocation6], 1
    %2090 = vsyncpa %s2089, 1

</llo_original>
